<compile_context>
chip_gen: v5e
topology: v5e:2x2
jax: 0.10.0
libtpu: 0.0.40
codegen_flags: <defaults>
</compile_context>

<pallas_src>
import jax
import jax.numpy as jnp
from jax.experimental import pallas as pl
from jax.experimental.pallas import tpu as pltpu

_LANE = 128


# ----------------------------------------------------------------------------
# Plain-JAX helpers (sampling / grouping glue, same semantics as the PyTorch
# reference helpers used by the module).
# ----------------------------------------------------------------------------
def furthest_point_sampling(xyz, n_samples):
    """xyz: [B, N, 3] -> [B, n_samples] int32 indices (deterministic, seed idx 0)."""
    B, N, _ = xyz.shape

    def body(i, state):
        dist, farthest, idxs = state
        idxs = idxs.at[:, i].set(farthest)
        centroid = jnp.take_along_axis(xyz, farthest[:, None, None], axis=1)  # [B,1,3]
        d = jnp.sum((xyz - centroid) ** 2, axis=-1)                           # [B,N]
        dist = jnp.minimum(dist, d)
        farthest = jnp.argmax(dist, axis=-1).astype(jnp.int32)
        return dist, farthest, idxs

    dist0 = jnp.full((B, N), 1e10, dtype=jnp.float32)
    far0 = jnp.zeros((B,), dtype=jnp.int32)
    idx0 = jnp.zeros((B, n_samples), dtype=jnp.int32)
    _, _, idxs = jax.lax.fori_loop(0, n_samples, body, (dist0, far0, idx0))
    return idxs


def batch_indexing(data, indices):
    """data: [B, N, C], indices: [B, ...] -> [B, ..., C]"""
    return jax.vmap(lambda d, i: d[i])(data, indices)


def ball_query(xyz, centroids, radius, k):
    """xyz: [B,N,3], centroids: [B,S,3] -> [B,S,k] int32 group indices."""
    N = xyz.shape[1]
    sqrdists = jnp.sum((centroids[:, :, None, :] - xyz[:, None, :, :]) ** 2, axis=-1)
    idx = jnp.broadcast_to(jnp.arange(N, dtype=jnp.int32), sqrdists.shape)
    idx = jnp.where(sqrdists > radius * radius, N, idx)
    idx = jnp.sort(idx, axis=-1)[:, :, :k]
    first = idx[:, :, 0:1]
    idx = jnp.where(idx == N, first, idx)
    return idx


# ----------------------------------------------------------------------------
# Tiling helpers.
# ----------------------------------------------------------------------------
def _round_up(x, m):
    return ((x + m - 1) // m) * m


def _vmem_info():
    """Best-effort (VMEM bytes per core, TensorCores per chip); conservative fallback."""
    vmem_cap = 64 * 1024 * 1024
    n_cores = 1
    try:
        info = pltpu.get_tpu_info()
        cap = getattr(info, "vmem_capacity_bytes", None)
        if cap:
            vmem_cap = int(cap)
        for attr in ("num_cores", "tensorcore_count", "num_tensorcores", "cores_per_chip"):
            v = getattr(info, attr, None)
            if v:
                n_cores = int(v)
                break
    except Exception:
        pass
    return vmem_cap, n_cores


def _choose_tile(M, K, c_in, c_mid_max, c_out_pad, budget_bytes, want_min_steps):
    """Groups (rows of the pooled output) per grid step, from the lane-padded
    VMEM layout: bf16 input x2 buffers + f32 intermediates + bf16 output x2."""
    in_row = K * _round_up(max(c_in, 1), _LANE) * 2 * 2          # bf16, double-buffered
    mid_row = K * _round_up(max(c_mid_max, 1), _LANE) * 4 * 2    # f32 intermediates (~2 live)
    out_row = _round_up(max(c_out_pad, 1), _LANE) * 2 * 2        # bf16 out, double-buffered
    per_group = in_row + mid_row + out_row
    tile = max(8, (budget_bytes // per_group) // 8 * 8)
    # Diminishing returns past ~16K rows per step.
    tile = min(tile, max(8, (16384 // max(K, 1)) // 8 * 8))
    tile = min(tile, max(8, _round_up(M, 8)))                    # don't over-pad tiny M
    if want_min_steps >= 2 and M >= 16 and pl.cdiv(M, tile) < want_min_steps:
        tile = max(8, _round_up(pl.cdiv(M, want_min_steps), 8))
    return tile


# ----------------------------------------------------------------------------
# Pallas kernel: BN-folded 1x1-conv MLP chain (bf16 MXU matmuls, f32 accumulate
# / elementwise) followed by a max-pool over the K points of each group.
# Grid = (scale, row-tile): both MSG scales run through one pallas_call.
# ----------------------------------------------------------------------------
def _make_msg_kernel(n_layers, tile, k_pts):
    def kernel(*refs):
        g_ref, out_ref = refs[0], refs[-1]        # g: [tile*K, C_in] bf16
        wb = refs[1:-1]                           # (w bf16 [Ci,Co], b f32 [1,Co]) pairs
        h = jnp.dot(g_ref[...], wb[0][...], preferred_element_type=jnp.float32)
        h = jnp.maximum(h + wb[1][...], 0.0)
        for li in range(1, n_layers):
            h = jnp.dot(h.astype(jnp.bfloat16), wb[2 * li][...],
                        preferred_element_type=jnp.float32)
            h = jnp.maximum(h + wb[2 * li + 1][...], 0.0)
        c = h.shape[-1]
        # K is a multiple of 8, so this leading-dim split is layout-free.
        out_ref[...] = jnp.max(h.reshape(tile, k_pts, c), axis=1).astype(out_ref.dtype)
    return kernel


def msg_mlp_maxpool(grouped, scale_layers, c_out_list):
    """grouped: [n_scales, M, K, C_in] bf16 (pre-centered xyz ++ features, K a
    multiple of 8, padded per-scale by duplicating points).
    scale_layers: per scale, list of (W_folded[Ci,Co] f32, bias[Co] f32); all
    scales must have the same layer count (widths may differ — zero-padded).
    Returns per-scale [M, C_out_s] f32 pooled features."""
    n_scales, M, K, c_in = grouped.shape
    n_layers = len(scale_layers[0])
    assert all(len(ls) == n_layers for ls in scale_layers)

    # Stack per-scale weights (zero-padded to common widths) on a leading axis.
    stacked_w, stacked_b, co_list = [], [], []
    for li in range(n_layers):
        ci_max = max(ls[li][0].shape[0] for ls in scale_layers)
        co_max = max(ls[li][0].shape[1] for ls in scale_layers)
        ws, bs = [], []
        for ls in scale_layers:
            w, b = ls[li]
            ws.append(jnp.pad(w, ((0, ci_max - w.shape[0]), (0, co_max - w.shape[1]))))
            bs.append(jnp.pad(b.reshape(1, -1), ((0, 0), (0, co_max - b.shape[0]))))
        stacked_w.append(jnp.stack(ws).astype(jnp.bfloat16))   # [n_scales, Ci, Co]
        stacked_b.append(jnp.stack(bs).astype(jnp.float32))    # [n_scales, 1, Co]
        co_list.append(co_max)

    # Lane policy for the output: pad to 128 only when wide enough to matter.
    co_last = co_list[-1]
    if co_last % _LANE == 0 or co_last < 64:
        c_out_pad = co_last
    else:
        c_out_pad = _round_up(co_last, _LANE)
    if c_out_pad != co_last:
        stacked_w[-1] = jnp.pad(stacked_w[-1], ((0, 0), (0, 0), (0, c_out_pad - co_last)))
        stacked_b[-1] = jnp.pad(stacked_b[-1], ((0, 0), (0, 0), (0, c_out_pad - co_last)))

    # Generation-aware VMEM limit and tile.
    vmem_cap, n_cores = _vmem_info()
    vmem_limit = max(32 << 20, min((vmem_cap * 3) // 4, 100 << 20))
    budget = (vmem_limit * 3) // 5       # headroom for weights / spills / epilogue
    want_min_steps = 2 if (n_cores >= 2 and n_scales < 2) else 1
    tile = _choose_tile(M, K, c_in, max(co_list), c_out_pad, budget, want_min_steps)
    M_pad = _round_up(M, tile)

    if M_pad != M:
        grouped = jnp.pad(grouped, ((0, 0), (0, M_pad - M), (0, 0), (0, 0)))
    g_flat = grouped.reshape(n_scales, M_pad * K, c_in)   # contiguous 2D rows per scale

    inputs = [g_flat]
    in_specs = [pl.BlockSpec((None, tile * K, c_in), lambda s, i: (s, i, 0))]
    for li in range(n_layers):
        w, b = stacked_w[li], stacked_b[li]
        inputs.extend([w, b])
        in_specs.append(pl.BlockSpec((None,) + w.shape[1:], lambda s, i: (s, 0, 0)))
        in_specs.append(pl.BlockSpec((None,) + b.shape[1:], lambda s, i: (s, 0, 0)))

    kernel = _make_msg_kernel(n_layers, tile, K)
    out = pl.pallas_call(
        kernel,
        out_shape=jax.ShapeDtypeStruct((n_scales, M_pad, c_out_pad), jnp.bfloat16),
        grid=(n_scales, M_pad // tile),
        in_specs=in_specs,
        out_specs=pl.BlockSpec((None, tile, c_out_pad), lambda s, i: (s, i, 0)),
        compiler_params=pltpu.CompilerParams(
            dimension_semantics=("parallel", "parallel"),
            vmem_limit_bytes=int(vmem_limit)),
    )(*inputs)

    return [out[s, :M, :c_out_list[s]].astype(jnp.float32) for s in range(n_scales)]


# ----------------------------------------------------------------------------
# Module wrapper with deterministic synthetic parameters.  BatchNorm is applied
# in eval (inference) mode; its scale is folded into the conv weight columns
# and its shift into a per-channel bias, both consumed by the Pallas kernel.
# ----------------------------------------------------------------------------
class PointNetPlusSetAbstractionMSGPallas:
    def __init__(self, n_samples, radius_list, n_points_per_group_list,
                 in_channels, mlp_out_channels_list, key):
        self.n_samples = n_samples
        self.radius_list = radius_list
        self.n_points_per_group_list = n_points_per_group_list
        self.mlp_out_channels_list = mlp_out_channels_list
        eps = 1e-5

        self.scale_layers = []  # per scale: list of (W_folded[Ci,Co], bias[Co])
        for mlp_out_channels in mlp_out_channels_list:
            last_c = in_channels
            layers = []
            for out_c in mlp_out_channels:
                key, kw, kb, kg, kbe, km, kv = jax.random.split(key, 7)
                # Conv2d(last_c, out_c, 1): weight [out_c, last_c, 1, 1], bias [out_c]
                w = (jax.random.normal(kw, (out_c, last_c), jnp.float32)
                     * (1.0 / jnp.sqrt(last_c)))
                conv_b = jax.random.normal(kb, (out_c,), jnp.float32) * 0.05
                # BatchNorm2d(out_c) params + running stats (deterministic).
                gamma = 1.0 + 0.1 * jax.random.normal(kg, (out_c,), jnp.float32)
                beta = 0.1 * jax.random.normal(kbe, (out_c,), jnp.float32)
                r_mean = 0.05 * jax.random.normal(km, (out_c,), jnp.float32)
                r_var = 1.0 + 0.1 * jnp.abs(jax.random.normal(kv, (out_c,), jnp.float32))
                # Fold: bn(conv(x)) = x @ (W^T * scale) + ((conv_b - mean)*scale + beta)
                scale = gamma / jnp.sqrt(r_var + eps)
                bias = (conv_b - r_mean) * scale + beta
                w_folded = w.T * scale[None, :]          # [Ci, Co], BN scale folded in
                layers.append((w_folded, bias))
                last_c = out_c
            self.scale_layers.append(layers)

    def out_channels(self):
        return sum(m[-1] for m in self.mlp_out_channels_list)

    def __call__(self, points_xyz, features=None):
        B, N = points_xyz.shape[0], points_xyz.shape[1]
        points_xyz = points_xyz.astype(jnp.float32)
        if features is None:
            features = jnp.zeros((B, N, 0), dtype=jnp.float32)
        features = features.astype(jnp.float32)

        S = self.n_samples
        centroid_idx = furthest_point_sampling(points_xyz, S)        # [B,S]
        centroids = batch_indexing(points_xyz, centroid_idx)         # [B,S,3]

        # Common K across scales (multiple of 8); pad by duplicating the first
        # ball-query index — max-pool is invariant to duplicated points.
        K_pad = _round_up(max(self.n_points_per_group_list), 8)

        grouped_list = []
        for radius, k_pts in zip(self.radius_list, self.n_points_per_group_list):
            idx = ball_query(points_xyz, centroids, radius, k_pts)   # [B,S,K]
            if K_pad > k_pts:
                pad_idx = jnp.broadcast_to(idx[..., :1], (B, S, K_pad - k_pts))
                idx = jnp.concatenate([idx, pad_idx], axis=-1)
            group_xyz = batch_indexing(points_xyz, idx)               # [B,S,Kp,3]
            group_feat = batch_indexing(features, idx)                # [B,S,Kp,Cf]
            # Centroid-relative xyz in f32 (avoid bf16 cancellation), then
            # concat + bf16 cast; XLA fuses this into the gather fusion.
            group_xyz = group_xyz - centroids[:, :, None, :]
            grouped = jnp.concatenate([group_xyz, group_feat], axis=-1)
            grouped_list.append(grouped.astype(jnp.bfloat16).reshape(B * S, K_pad, -1))
        grouped_stack = jnp.stack(grouped_list, axis=0)               # [ns, B*S, Kp, Cin]

        c_out_list = [m[-1] for m in self.mlp_out_channels_list]
        same_depth = len(set(len(m) for m in self.mlp_out_channels_list)) == 1
        if same_depth:
            pooled = msg_mlp_maxpool(grouped_stack, self.scale_layers, c_out_list)
        else:
            # TODO(synk): scales with different MLP depths fall back to one call per scale.
            pooled = []
            for s in range(len(self.scale_layers)):
                pooled += msg_mlp_maxpool(grouped_stack[s:s + 1],
                                          [self.scale_layers[s]], [c_out_list[s]])

        multi_scale = jnp.concatenate([p.reshape(B, S, -1) for p in pooled], axis=-1)
        return centroids, multi_scale


# ----------------------------------------------------------------------------
if __name__ == "__main__":
    key = jax.random.PRNGKey(0)
    k_xyz, k_feat, k_params = jax.random.split(key, 3)

    B, N = 2, 64
    n_samples = 16
    radius_list = [0.2, 0.4]
    n_points_per_group_list = [8, 16]
    feat_dim = 3
    in_channels = 3 + feat_dim
    mlp_out_channels_list = [[16, 32], [16, 32]]

    points_xyz = jax.random.uniform(k_xyz, (B, N, 3), dtype=jnp.float32)
    features = 0.1 * jax.random.normal(k_feat, (B, N, feat_dim), dtype=jnp.float32)

    module = PointNetPlusSetAbstractionMSGPallas(
        n_samples, radius_list, n_points_per_group_list,
        in_channels, mlp_out_channels_list, k_params)

    fwd = jax.jit(module.__call__)
    centroids, msf = fwd(points_xyz, features)
    centroids, msf = jax.block_until_ready((centroids, msf))

    assert centroids.shape == (B, n_samples, 3), centroids.shape
    assert msf.shape == (B, n_samples, module.out_channels()), msf.shape
    assert jnp.all(jnp.isfinite(centroids)) and jnp.all(jnp.isfinite(msf))
    print("KERNEL_OK")
</pallas_src>

<mosaic_0001>
module attributes {stable_mosaic.version = 11 : i64} {
  func.func @kernel(%arg0: i32, %arg1: i32, %arg2: memref<1x512x6xbf16, #tpu.memory_space<vmem>>, %arg3: memref<1x6x16xbf16, #tpu.memory_space<vmem>>, %arg4: memref<1x1x16xf32, #tpu.memory_space<vmem>>, %arg5: memref<1x16x32xbf16, #tpu.memory_space<vmem>>, %arg6: memref<1x1x32xf32, #tpu.memory_space<vmem>>, %arg7: memref<1x32x32xbf16, #tpu.memory_space<vmem>>) attributes {dimension_semantics = [#tpu.dimension_semantics<parallel>, #tpu.dimension_semantics<parallel>], iteration_bounds = array<i64: 2, 1>, scalar_prefetch = 0 : i64, scratch_operands = 0 : i64, tpu.core_type = #tpu.core_type<tc>, window_params = [{transform_indices = @transform_0, window_bounds = array<i64: 1, 512, 6>}, {transform_indices = @transform_1, window_bounds = array<i64: 1, 6, 16>}, {transform_indices = @transform_2, window_bounds = array<i64: 1, 1, 16>}, {transform_indices = @transform_3, window_bounds = array<i64: 1, 16, 32>}, {transform_indices = @transform_4, window_bounds = array<i64: 1, 1, 32>}, {transform_indices = @transform_5, window_bounds = array<i64: 1, 32, 32>}]} {
    %c0 = arith.constant 0 : index
    %c0_0 = arith.constant 0 : index
    %c0_1 = arith.constant 0 : index
    %0 = vector.load %arg2[%c0, %c0_0, %c0_1] : memref<1x512x6xbf16, #tpu.memory_space<vmem>>, vector<1x512x6xbf16>
    %1 = vector.shape_cast %0 : vector<1x512x6xbf16> to vector<512x6xbf16>
    %c0_2 = arith.constant 0 : index
    %c0_3 = arith.constant 0 : index
    %c0_4 = arith.constant 0 : index
    %2 = vector.load %arg3[%c0_2, %c0_3, %c0_4] : memref<1x6x16xbf16, #tpu.memory_space<vmem>>, vector<1x6x16xbf16>
    %3 = vector.shape_cast %2 : vector<1x6x16xbf16> to vector<6x16xbf16>
    %cst = arith.constant dense<0.000000e+00> : vector<512x16xf32>
    %4 = tpu.matmul %1, %3, %cst {dimension_numbers = #tpu.dot_dimension_numbers<[1], [0], [0], [1], [0, 0, 1, 1], [], []>} : vector<512x6xbf16>, vector<6x16xbf16>, vector<512x16xf32> -> vector<512x16xf32>
    %c0_5 = arith.constant 0 : index
    %c0_6 = arith.constant 0 : index
    %c0_7 = arith.constant 0 : index
    %5 = vector.load %arg4[%c0_5, %c0_6, %c0_7] : memref<1x1x16xf32, #tpu.memory_space<vmem>>, vector<1x1x16xf32>
    %6 = vector.shape_cast %5 : vector<1x1x16xf32> to vector<1x16xf32>
    %7 = vector.broadcast %6 : vector<1x16xf32> to vector<512x16xf32>
    %8 = arith.addf %4, %7 : vector<512x16xf32>
    %cst_8 = arith.constant 0.000000e+00 : f32
    %9 = vector.broadcast %cst_8 : f32 to vector<512x16xf32>
    %10 = arith.maximumf %8, %9 : vector<512x16xf32>
    %11 = arith.truncf %10 : vector<512x16xf32> to vector<512x16xbf16>
    %c0_9 = arith.constant 0 : index
    %c0_10 = arith.constant 0 : index
    %c0_11 = arith.constant 0 : index
    %12 = vector.load %arg5[%c0_9, %c0_10, %c0_11] : memref<1x16x32xbf16, #tpu.memory_space<vmem>>, vector<1x16x32xbf16>
    %13 = vector.shape_cast %12 : vector<1x16x32xbf16> to vector<16x32xbf16>
    %cst_12 = arith.constant dense<0.000000e+00> : vector<512x32xf32>
    %14 = tpu.matmul %11, %13, %cst_12 {dimension_numbers = #tpu.dot_dimension_numbers<[1], [0], [0], [1], [0, 0, 1, 1], [], []>} : vector<512x16xbf16>, vector<16x32xbf16>, vector<512x32xf32> -> vector<512x32xf32>
    %c0_13 = arith.constant 0 : index
    %c0_14 = arith.constant 0 : index
    %c0_15 = arith.constant 0 : index
    %15 = vector.load %arg6[%c0_13, %c0_14, %c0_15] : memref<1x1x32xf32, #tpu.memory_space<vmem>>, vector<1x1x32xf32>
    %16 = vector.shape_cast %15 : vector<1x1x32xf32> to vector<1x32xf32>
    %17 = vector.broadcast %16 : vector<1x32xf32> to vector<512x32xf32>
    %18 = arith.addf %14, %17 : vector<512x32xf32>
    %cst_16 = arith.constant 0.000000e+00 : f32
    %19 = vector.broadcast %cst_16 : f32 to vector<512x32xf32>
    %20 = arith.maximumf %18, %19 : vector<512x32xf32>
    %21 = vector.shape_cast %20 : vector<512x32xf32> to vector<32x16x32xf32>
    %cst_17 = arith.constant dense<0xFF800000> : vector<32x32xf32>
    %22 = vector.multi_reduction <maximumf>, %21, %cst_17 [1] : vector<32x16x32xf32> to vector<32x32xf32>
    %23 = arith.truncf %22 : vector<32x32xf32> to vector<32x32xbf16>
    %c0_18 = arith.constant 0 : index
    %c0_19 = arith.constant 0 : index
    %c0_20 = arith.constant 0 : index
    %24 = vector.load %arg7[%c0_18, %c0_19, %c0_20] : memref<1x32x32xbf16, #tpu.memory_space<vmem>>, vector<1x32x32xbf16>
    %25 = vector.shape_cast %24 : vector<1x32x32xbf16> to vector<32x32xbf16>
    %26 = vector.shape_cast %23 : vector<32x32xbf16> to vector<1x32x32xbf16>
    tpu.vector_store %arg7[%c0_18, %c0_19, %c0_20], %26 {strides = array<i32>} : memref<1x32x32xbf16, #tpu.memory_space<vmem>>, vector<1x32x32xbf16>,
    return
  }
  func.func @transform_0(%arg0: i32, %arg1: i32) -> (i32, i32, i32) {
    %c0_i32 = arith.constant 0 : i32
    %c0_i32_0 = arith.constant 0 : i32
    return %arg0, %arg1, %c0_i32 : i32, i32, i32
  }
  func.func @transform_1(%arg0: i32, %arg1: i32) -> (i32, i32, i32) {
    %c0_i32 = arith.constant 0 : i32
    %c0_i32_0 = arith.constant 0 : i32
    %c0_i32_1 = arith.constant 0 : i32
    return %arg0, %c0_i32, %c0_i32_0 : i32, i32, i32
  }
  func.func @transform_2(%arg0: i32, %arg1: i32) -> (i32, i32, i32) {
    %c0_i32 = arith.constant 0 : i32
    %c0_i32_0 = arith.constant 0 : i32
    %c0_i32_1 = arith.constant 0 : i32
    return %arg0, %c0_i32, %c0_i32_0 : i32, i32, i32
  }
  func.func @transform_3(%arg0: i32, %arg1: i32) -> (i32, i32, i32) {
    %c0_i32 = arith.constant 0 : i32
    %c0_i32_0 = arith.constant 0 : i32
    %c0_i32_1 = arith.constant 0 : i32
    return %arg0, %c0_i32, %c0_i32_0 : i32, i32, i32
  }
  func.func @transform_4(%arg0: i32, %arg1: i32) -> (i32, i32, i32) {
    %c0_i32 = arith.constant 0 : i32
    %c0_i32_0 = arith.constant 0 : i32
    %c0_i32_1 = arith.constant 0 : i32
    return %arg0, %c0_i32, %c0_i32_0 : i32, i32, i32
  }
  func.func @transform_5(%arg0: i32, %arg1: i32) -> (i32, i32, i32) {
    %c0_i32 = arith.constant 0 : i32
    %c0_i32_0 = arith.constant 0 : i32
    return %arg0, %arg1, %c0_i32 : i32, i32, i32
  }
}

</mosaic_0001>

<llo_original>
// kernel: custom-call.12
$region0: #{custom-call.12}
  %s0 = inlined_call_operand.vmem [shape: f32[2,64], index: 0, kind: output, shape index: {}]

// kernel: a_call__.1
$region0: #{a_call__.1}
  #allocation0 [shape = 'u32[]', space=smem, size = 0x4, offset = 0x4, fixed_abs, tag = 'smem constant byte address 0x4 - core index']
  #allocation1 [shape = 'u32[72,128]{1,0:T(1,128)}', space=vmem, size = 0x9000, scoped, tag = 'internal scratch']
  %s0 = inlined_call_operand.vmem [shape: bf16[2,512,6], index: 0, kind: input, shape index: {}]
  %s1 = inlined_call_operand.vmem [shape: bf16[2,6,16], index: 1, kind: input, shape index: {}]
  %s2 = inlined_call_operand.vmem [shape: f32[2,1,16], index: 2, kind: input, shape index: {}]
  %s3 = inlined_call_operand.vmem [shape: bf16[2,16,32], index: 3, kind: input, shape index: {}]
  %s4 = inlined_call_operand.vmem [shape: f32[2,1,32], index: 4, kind: input, shape index: {}]
  %s5 = inlined_call_operand.vmem [shape: bf16[2,32,32], index: 5, kind: output, shape index: {}]
  %s6 = sld [smem:[#allocation0]]
  $region53: #{a_call__.1} parent=0
    _
  %s8 = ssub.s32 1, %s6
  %s9 = scalar_select 0, %s8, %s6
  loop: start=0, step=1, limit=4
  $region2: #{a_call__.1} parent=0 // loop_pre_header
    _
  $region3: #{a_call__.1} parent=0 // loop_header
    %s11 = sphi 0, %s15
    %p12 = scmp.ge.s32.totalorder %s11, 4
    %s18 = sphi 0, %s30
    %s19 = sphi 0, %s26
    %s20 = sphi 0, %s18
    %s21 = sphi 0, %s19
    %s22 = sphi 0, %s20
    %s23 = sphi 0, %s21
    %s35 = sphi 0, %s37
    %s38 = sphi 0, %s35
    %s39 = sphi 0, %s38
    %s55 = sphi 0, %s39
    %s61 = sphi 0, %s63
    %s64 = sphi 0, %s61
    %s65 = sphi 0, %s64
    %s81 = sphi 0, %s65
    %s87 = sphi 0, %s89
    %s90 = sphi 0, %s87
    %s91 = sphi 0, %s90
    %s107 = sphi 0, %s91
    %s113 = sphi 0, %s115
    %s116 = sphi 0, %s113
    %s117 = sphi 0, %s116
    %s133 = sphi 0, %s117
    %s139 = sphi 0, %s141
    %s142 = sphi 0, %s139
    %s143 = sphi 0, %s142
    %s159 = sphi 0, %s143
    %s167 = sphi 0, %s169
    %s170 = sphi 0, %s167
    %s171 = sphi 0, %s170
    %s187 = sphi 0, %s171
  $region4: #{a_call__.1} parent=0 // loop_header_branch
    %14 = sbr.rel (%p12) target = $region8
  $region5: #{a_call__.1} parent=0 // loop_body
    %s16 = ssub.s32 %s11, 1
    %s17 = ssub.s32 %s11, 2
    %s24 = sadd.s32 1, %s19
    %p25 = scmp.ge.s32.totalorder %s24, 1
    %s26 = scalar_select %p25, 0, %s24
    %s27 = sadd.s32 1, %s18
    %s28 = scalar_select %p25, %s27, %s18
    %p29 = scmp.ge.s32.totalorder %s28, 2
    %s30 = scalar_select %p29, 0, %s28
    %s31 = ssub.s32 %s18, %s30
    %s32 = ssub.s32 %s19, %s26
    %s33 = sor.u32 %s31, %s32
    %p34 = scmp.eq.s32.totalorder %s33, 0
    %s36 = sadd.s32 %s35, 1
    %s37 = scalar_select %p34, %s35, %s36
    %p40 = pneg %p34
    %p41 = scmp.eq.s32.totalorder %s11, 1
    %p42 = por %p40, %p41
    %p43 = scmp.ne.s32.totalorder %s35, %s38
    %p44 = scmp.eq.s32.totalorder %s11, 0
    %p45 = por %p43, %p44
    %p46 = scmp.ne.s32.totalorder %s35, %s38
    %p47 = scmp.eq.s32.totalorder %s16, 1
    %p48 = por %p46, %p47
    %p49 = scmp.ne.s32.totalorder %s38, %s39
    %p50 = scmp.eq.s32.totalorder %s16, 0
    %p51 = por %p49, %p50
    %p52 = scmp.ne.s32.totalorder %s38, %s39
    %p53 = scmp.eq.s32.totalorder %s17, 1
    %p54 = por %p52, %p53
    %p56 = scmp.ne.s32.totalorder %s39, %s55
    %p57 = scmp.eq.s32.totalorder %s17, 0
    %p58 = por %p56, %p57
    %s59 = ssub.s32 %s18, %s30
    %p60 = scmp.eq.s32.totalorder %s59, 0
    %s62 = sadd.s32 %s61, 1
    %s63 = scalar_select %p60, %s61, %s62
    %p66 = pneg %p60
    %p67 = scmp.eq.s32.totalorder %s11, 1
    %p68 = por %p66, %p67
    %p69 = scmp.ne.s32.totalorder %s61, %s64
    %p70 = scmp.eq.s32.totalorder %s11, 0
    %p71 = por %p69, %p70
    %p72 = scmp.ne.s32.totalorder %s61, %s64
    %p73 = scmp.eq.s32.totalorder %s16, 1
    %p74 = por %p72, %p73
    %p75 = scmp.ne.s32.totalorder %s64, %s65
    %p76 = scmp.eq.s32.totalorder %s16, 0
    %p77 = por %p75, %p76
    %p78 = scmp.ne.s32.totalorder %s64, %s65
    %p79 = scmp.eq.s32.totalorder %s17, 1
    %p80 = por %p78, %p79
    %p82 = scmp.ne.s32.totalorder %s65, %s81
    %p83 = scmp.eq.s32.totalorder %s17, 0
    %p84 = por %p82, %p83
    %s85 = ssub.s32 %s18, %s30
    %p86 = scmp.eq.s32.totalorder %s85, 0
    %s88 = sadd.s32 %s87, 1
    %s89 = scalar_select %p86, %s87, %s88
    %p92 = pneg %p86
    %p93 = scmp.eq.s32.totalorder %s11, 1
    %p94 = por %p92, %p93
    %p95 = scmp.ne.s32.totalorder %s87, %s90
    %p96 = scmp.eq.s32.totalorder %s11, 0
    %p97 = por %p95, %p96
    %p98 = scmp.ne.s32.totalorder %s87, %s90
    %p99 = scmp.eq.s32.totalorder %s16, 1
    %p100 = por %p98, %p99
    %p101 = scmp.ne.s32.totalorder %s90, %s91
    %p102 = scmp.eq.s32.totalorder %s16, 0
    %p103 = por %p101, %p102
    %p104 = scmp.ne.s32.totalorder %s90, %s91
    %p105 = scmp.eq.s32.totalorder %s17, 1
    %p106 = por %p104, %p105
    %p108 = scmp.ne.s32.totalorder %s91, %s107
    %p109 = scmp.eq.s32.totalorder %s17, 0
    %p110 = por %p108, %p109
    %s111 = ssub.s32 %s18, %s30
    %p112 = scmp.eq.s32.totalorder %s111, 0
    %s114 = sadd.s32 %s113, 1
    %s115 = scalar_select %p112, %s113, %s114
    %p118 = pneg %p112
    %p119 = scmp.eq.s32.totalorder %s11, 1
    %p120 = por %p118, %p119
    %p121 = scmp.ne.s32.totalorder %s113, %s116
    %p122 = scmp.eq.s32.totalorder %s11, 0
    %p123 = por %p121, %p122
    %p124 = scmp.ne.s32.totalorder %s113, %s116
    %p125 = scmp.eq.s32.totalorder %s16, 1
    %p126 = por %p124, %p125
    %p127 = scmp.ne.s32.totalorder %s116, %s117
    %p128 = scmp.eq.s32.totalorder %s16, 0
    %p129 = por %p127, %p128
    %p130 = scmp.ne.s32.totalorder %s116, %s117
    %p131 = scmp.eq.s32.totalorder %s17, 1
    %p132 = por %p130, %p131
    %p134 = scmp.ne.s32.totalorder %s117, %s133
    %p135 = scmp.eq.s32.totalorder %s17, 0
    %p136 = por %p134, %p135
    %s137 = ssub.s32 %s18, %s30
    %p138 = scmp.eq.s32.totalorder %s137, 0
    %s140 = sadd.s32 %s139, 1
    %s141 = scalar_select %p138, %s139, %s140
    %p144 = pneg %p138
    %p145 = scmp.eq.s32.totalorder %s11, 1
    %p146 = por %p144, %p145
    %p147 = scmp.ne.s32.totalorder %s139, %s142
    %p148 = scmp.eq.s32.totalorder %s11, 0
    %p149 = por %p147, %p148
    %p150 = scmp.ne.s32.totalorder %s139, %s142
    %p151 = scmp.eq.s32.totalorder %s16, 1
    %p152 = por %p150, %p151
    %p153 = scmp.ne.s32.totalorder %s142, %s143
    %p154 = scmp.eq.s32.totalorder %s16, 0
    %p155 = por %p153, %p154
    %p156 = scmp.ne.s32.totalorder %s142, %s143
    %p157 = scmp.eq.s32.totalorder %s17, 1
    %p158 = por %p156, %p157
    %p160 = scmp.ne.s32.totalorder %s143, %s159
    %p161 = scmp.eq.s32.totalorder %s17, 0
    %p162 = por %p160, %p161
    %s163 = ssub.s32 %s18, %s30
    %s164 = ssub.s32 %s19, %s26
    %s165 = sor.u32 %s163, %s164
    %p166 = scmp.eq.s32.totalorder %s165, 0
    %s168 = sadd.s32 %s167, 1
    %s169 = scalar_select %p166, %s167, %s168
    %p172 = pneg %p166
    %p173 = scmp.eq.s32.totalorder %s11, 1
    %p174 = por %p172, %p173
    %p175 = scmp.ne.s32.totalorder %s167, %s170
    %p176 = scmp.eq.s32.totalorder %s11, 0
    %p177 = por %p175, %p176
    %p178 = scmp.ne.s32.totalorder %s167, %s170
    %p179 = scmp.eq.s32.totalorder %s16, 1
    %p180 = por %p178, %p179
    %p181 = scmp.ne.s32.totalorder %s170, %s171
    %p182 = scmp.eq.s32.totalorder %s16, 0
    %p183 = por %p181, %p182
    %p184 = scmp.ne.s32.totalorder %s170, %s171
    %p185 = scmp.eq.s32.totalorder %s17, 1
    %p186 = por %p184, %p185
    %p188 = scmp.ne.s32.totalorder %s171, %s187
    %p189 = scmp.eq.s32.totalorder %s17, 0
    %p190 = por %p188, %p189
    %p191 = scmp.le.s32.totalorder 1, %s11
    %p192 = scmp.lt.s32.totalorder %s11, 3
    %p193 = pnand %p191, %p192
    %p194 = pneg %p193
    // Predicated region
    $region9: #{a_call__.1} parent=5 // pred_check
      _
    $region10: #{a_call__.1} parent=5 // pred_check_branch
      %196 = sbr.rel (%p193) target = $region12
    $region11: #{a_call__.1} parent=5 // pred_region
      %s197 = ssub.s32 %s11, 1
    $region12: #{a_call__.1} parent=5 // pred_fallthru
      _
    %p198 = scmp.lt.s32.totalorder %s11, 2
    // Predicated region
    $region13: #{a_call__.1} parent=5 // pred_check
      %p199 = pneg %p198
    $region14: #{a_call__.1} parent=5 // pred_check_branch
      %201 = sbr.rel (%p199) target = $region16
    $region15: #{a_call__.1} parent=5 // pred_region
      // Predicated region
      $region17: #{a_call__.1} parent=15 // pred_check
        %p202 = pneg %p45
      $region18: #{a_call__.1} parent=15 // pred_check_branch
        %204 = sbr.rel (%p202) target = $region20
      $region19: #{a_call__.1} parent=15 // pred_region
        %s205 = smul.u32 64, %s19
        %p206 = scmp.lt.s32.totalorder %s18, 1
        %s207 = scalar_select %p206, %s18, 1
        %p208 = scmp.lt.s32.totalorder %s205, 63
        %s209 = scalar_select %p208, %s205, 63
        %s210 = smul.addr %s207, 64
        %s211 = sadd.s32 %s209, %s210
        %s212 = smul.addr %s211, 4
        %s213 = scalar_lea.vmem %s0, %s212
        %s214 = smul.u32 64, %s19
      $region20: #{a_call__.1} parent=15 // pred_fallthru
        _
      // Predicated region
      $region21: #{a_call__.1} parent=15 // pred_check
        %p215 = pneg %p71
      $region22: #{a_call__.1} parent=15 // pred_check_branch
        %217 = sbr.rel (%p215) target = $region24
      $region23: #{a_call__.1} parent=15 // pred_region
        %p218 = scmp.lt.s32.totalorder %s18, 1
        %s219 = scalar_select %p218, %s18, 1
        %s220 = smul.addr %s219, 4
        %s221 = scalar_lea.vmem %s1, %s220
      $region24: #{a_call__.1} parent=15 // pred_fallthru
        _
      // Predicated region
      $region25: #{a_call__.1} parent=15 // pred_check
        %p222 = pneg %p97
      $region26: #{a_call__.1} parent=15 // pred_check_branch
        %224 = sbr.rel (%p222) target = $region28
      $region27: #{a_call__.1} parent=15 // pred_region
        %p225 = scmp.lt.s32.totalorder %s18, 1
        %s226 = scalar_select %p225, %s18, 1
        %s227 = scalar_lea.vmem %s2, %s226
      $region28: #{a_call__.1} parent=15 // pred_fallthru
        _
      // Predicated region
      $region29: #{a_call__.1} parent=15 // pred_check
        %p228 = pneg %p123
      $region30: #{a_call__.1} parent=15 // pred_check_branch
        %230 = sbr.rel (%p228) target = $region32
      $region31: #{a_call__.1} parent=15 // pred_region
        %p231 = scmp.lt.s32.totalorder %s18, 1
        %s232 = scalar_select %p231, %s18, 1
        %s233 = smul.addr %s232, 2
        %s234 = smul.addr %s233, 4
        %s235 = scalar_lea.vmem %s3, %s234
      $region32: #{a_call__.1} parent=15 // pred_fallthru
        _
      // Predicated region
      $region33: #{a_call__.1} parent=15 // pred_check
        %p236 = pneg %p149
      $region34: #{a_call__.1} parent=15 // pred_check_branch
        %238 = sbr.rel (%p236) target = $region36
      $region35: #{a_call__.1} parent=15 // pred_region
        %p239 = scmp.lt.s32.totalorder %s18, 1
        %s240 = scalar_select %p239, %s18, 1
        %s241 = scalar_lea.vmem %s4, %s240
      $region36: #{a_call__.1} parent=15 // pred_fallthru
        _
    $region16: #{a_call__.1} parent=5 // pred_fallthru
      _
    %p242 = scmp.le.s32.totalorder 1, %s11
    %p243 = scmp.lt.s32.totalorder %s11, 3
    %p244 = pnand %p242, %p243
    %p245 = pneg %p244
    // Predicated region
    $region37: #{a_call__.1} parent=5 // pred_check
      _
    $region38: #{a_call__.1} parent=5 // pred_check_branch
      %247 = sbr.rel (%p244) target = $region40
    $region39: #{a_call__.1} parent=5 // pred_region
      %s248 = ssub.s32 %s11, 1
      %s249 = smul.u32 64, %s21
      %p250 = scmp.lt.s32.totalorder %s20, 1
      %s251 = scalar_select %p250, %s20, 1
      %p252 = scmp.lt.s32.totalorder %s249, 63
      %s253 = scalar_select %p252, %s249, 63
      %s254 = smul.addr %s251, 64
      %s255 = sadd.s32 %s253, %s254
      %s256 = smul.addr %s255, 4
      %s257 = scalar_lea.vmem %s0, %s256
      %p258 = pneg %p51
      %p259 = pneg %p48
      %p260 = scmp.lt.s32.totalorder %s20, 1
      %s261 = scalar_select %p260, %s20, 1
      %s262 = smul.addr %s261, 4
      %s263 = scalar_lea.vmem %s1, %s262
      %p264 = pneg %p77
      %p265 = pneg %p74
      %p266 = scmp.lt.s32.totalorder %s20, 1
      %s267 = scalar_select %p266, %s20, 1
      %s268 = scalar_lea.vmem %s2, %s267
      %p269 = pneg %p103
      %p270 = pneg %p100
      %p271 = scmp.lt.s32.totalorder %s20, 1
      %s272 = scalar_select %p271, %s20, 1
      %s273 = smul.addr %s272, 2
      %s274 = smul.addr %s273, 4
      %s275 = scalar_lea.vmem %s3, %s274
      %p276 = pneg %p129
      %p277 = pneg %p126
      %p278 = scmp.lt.s32.totalorder %s20, 1
      %s279 = scalar_select %p278, %s20, 1
      %s280 = scalar_lea.vmem %s4, %s279
      %p281 = pneg %p155
      %p282 = pneg %p152
      %p283 = pneg %p183
      %p284 = pneg %p180
      %s285 = smul.u32 4, %s21
      %p286 = scmp.lt.s32.totalorder %s20, 1
      %s287 = scalar_select %p286, %s20, 1
      %p288 = scmp.lt.s32.totalorder %s285, 3
      %s289 = scalar_select %p288, %s285, 3
      %s290 = smul.addr %s287, 4
      %s291 = sadd.s32 %s289, %s290
      %s292 = smul.addr %s291, 4
      %s293 = scalar_lea.vmem %s5, %s292
      %s294 = smul.u32 64, %s21
      %p295 = scmp.lt.s32.totalorder %s20, 1
      %s296 = scalar_select %p295, %s20, 1
      %p297 = scmp.lt.s32.totalorder %s294, 63
      %s298 = scalar_select %p297, %s294, 63
      %s299 = smul.addr %s296, 64
      %s300 = sadd.s32 %s298, %s299
      %s301 = smul.addr %s300, 4
      %s302 = scalar_lea.vmem %s0, %s301
      %s303 = smul.u32 64, %s21
      %p304 = scmp.lt.s32.totalorder %s20, 1
      %s305 = scalar_select %p304, %s20, 1
      %s306 = smul.addr %s305, 4
      %s307 = scalar_lea.vmem %s1, %s306
      %p308 = scmp.lt.s32.totalorder %s20, 1
      %s309 = scalar_select %p308, %s20, 1
      %s310 = scalar_lea.vmem %s2, %s309
      %p311 = scmp.lt.s32.totalorder %s20, 1
      %s312 = scalar_select %p311, %s20, 1
      %s313 = smul.addr %s312, 2
      %s314 = smul.addr %s313, 4
      %s315 = scalar_lea.vmem %s3, %s314
      %p316 = scmp.lt.s32.totalorder %s20, 1
      %s317 = scalar_select %p316, %s20, 1
      %s318 = scalar_lea.vmem %s4, %s317
      %s319 = smul.u32 4, %s21
      %p320 = scmp.lt.s32.totalorder %s20, 1
      %s321 = scalar_select %p320, %s20, 1
      %p322 = scmp.lt.s32.totalorder %s319, 3
      %s323 = scalar_select %p322, %s319, 3
      %s324 = smul.addr %s321, 4
      %s325 = sadd.s32 %s323, %s324
      %s326 = smul.addr %s325, 4
      %s327 = scalar_lea.vmem %s5, %s326
      %s328 = smul.u32 4, %s21
      %v330 = vld [vmem:[%s302] sm:$0xf]
      %v331 = vld [vmem:[%s302 + $0x4] sm:$0xf]
      %v332 = vld [vmem:[%s302 + $0x8] sm:$0xf]
      %v333 = vld [vmem:[%s302 + $0xc] sm:$0xf]
      %v334 = vld [vmem:[%s302 + $0x10] sm:$0xf]
      %v335 = vld [vmem:[%s302 + $0x14] sm:$0xf]
      %v336 = vld [vmem:[%s302 + $0x18] sm:$0xf]
      %v337 = vld [vmem:[%s302 + $0x1c] sm:$0xf]
      %v338 = vld [vmem:[%s302 + $0x20] sm:$0xf]
      %v339 = vld [vmem:[%s302 + $0x24] sm:$0xf]
      %v340 = vld [vmem:[%s302 + $0x28] sm:$0xf]
      %v341 = vld [vmem:[%s302 + $0x2c] sm:$0xf]
      %v342 = vld [vmem:[%s302 + $0x30] sm:$0xf]
      %v343 = vld [vmem:[%s302 + $0x34] sm:$0xf]
      %v344 = vld [vmem:[%s302 + $0x38] sm:$0xf]
      %v345 = vld [vmem:[%s302 + $0x3c] sm:$0xf]
      %v346 = vld [vmem:[%s302 + $0x40] sm:$0xf]
      %v347 = vld [vmem:[%s302 + $0x44] sm:$0xf]
      %v348 = vld [vmem:[%s302 + $0x48] sm:$0xf]
      %v349 = vld [vmem:[%s302 + $0x4c] sm:$0xf]
      %v350 = vld [vmem:[%s302 + $0x50] sm:$0xf]
      %v351 = vld [vmem:[%s302 + $0x54] sm:$0xf]
      %v352 = vld [vmem:[%s302 + $0x58] sm:$0xf]
      %v353 = vld [vmem:[%s302 + $0x5c] sm:$0xf]
      %v354 = vld [vmem:[%s302 + $0x60] sm:$0xf]
      %v355 = vld [vmem:[%s302 + $0x64] sm:$0xf]
      %v356 = vld [vmem:[%s302 + $0x68] sm:$0xf]
      %v357 = vld [vmem:[%s302 + $0x6c] sm:$0xf]
      %v358 = vld [vmem:[%s302 + $0x70] sm:$0xf]
      %v359 = vld [vmem:[%s302 + $0x74] sm:$0xf]
      %v360 = vld [vmem:[%s302 + $0x78] sm:$0xf]
      %v361 = vld [vmem:[%s302 + $0x7c] sm:$0xf]
      %v362 = vld [vmem:[%s302 + $0x80] sm:$0xf]
      %v363 = vld [vmem:[%s302 + $0x84] sm:$0xf]
      %v364 = vld [vmem:[%s302 + $0x88] sm:$0xf]
      %v365 = vld [vmem:[%s302 + $0x8c] sm:$0xf]
      %v366 = vld [vmem:[%s302 + $0x90] sm:$0xf]
      %v367 = vld [vmem:[%s302 + $0x94] sm:$0xf]
      %v368 = vld [vmem:[%s302 + $0x98] sm:$0xf]
      %v369 = vld [vmem:[%s302 + $0x9c] sm:$0xf]
      %v370 = vld [vmem:[%s302 + $0xa0] sm:$0xf]
      %v371 = vld [vmem:[%s302 + $0xa4] sm:$0xf]
      %v372 = vld [vmem:[%s302 + $0xa8] sm:$0xf]
      %v373 = vld [vmem:[%s302 + $0xac] sm:$0xf]
      %v374 = vld [vmem:[%s302 + $0xb0] sm:$0xf]
      %v375 = vld [vmem:[%s302 + $0xb4] sm:$0xf]
      %v376 = vld [vmem:[%s302 + $0xb8] sm:$0xf]
      %v377 = vld [vmem:[%s302 + $0xbc] sm:$0xf]
      %v378 = vld [vmem:[%s302 + $0xc0] sm:$0xf]
      %v379 = vld [vmem:[%s302 + $0xc4] sm:$0xf]
      %v380 = vld [vmem:[%s302 + $0xc8] sm:$0xf]
      %v381 = vld [vmem:[%s302 + $0xcc] sm:$0xf]
      %v382 = vld [vmem:[%s302 + $0xd0] sm:$0xf]
      %v383 = vld [vmem:[%s302 + $0xd4] sm:$0xf]
      %v384 = vld [vmem:[%s302 + $0xd8] sm:$0xf]
      %v385 = vld [vmem:[%s302 + $0xdc] sm:$0xf]
      %v386 = vld [vmem:[%s302 + $0xe0] sm:$0xf]
      %v387 = vld [vmem:[%s302 + $0xe4] sm:$0xf]
      %v388 = vld [vmem:[%s302 + $0xe8] sm:$0xf]
      %v389 = vld [vmem:[%s302 + $0xec] sm:$0xf]
      %v390 = vld [vmem:[%s302 + $0xf0] sm:$0xf]
      %v391 = vld [vmem:[%s302 + $0xf4] sm:$0xf]
      %v392 = vld [vmem:[%s302 + $0xf8] sm:$0xf]
      %v393 = vld [vmem:[%s302 + $0xfc] sm:$0xf]
      %v394 = vld [vmem:[%s307] sm:$0x7]
      %v395 = vld [vmem:[%s310] sm:$0x1]
      %v397 = vperm.slane %v395, 0
      %v463 = vunpack.c.l.b16 %v330
      %v464 = vunpack.c.l.b16 %v331
      %v465 = vunpack.c.l.b16 %v332
      %v466 = vunpack.c.l.b16 %v333
      %v467 = vunpack.c.l.b16 %v334
      %v468 = vunpack.c.l.b16 %v335
      %v469 = vunpack.c.l.b16 %v336
      %v470 = vunpack.c.l.b16 %v337
      %v471 = vunpack.c.l.b16 %v338
      %v472 = vunpack.c.l.b16 %v339
      %v473 = vunpack.c.l.b16 %v340
      %v474 = vunpack.c.l.b16 %v341
      %v475 = vunpack.c.l.b16 %v342
      %v476 = vunpack.c.l.b16 %v343
      %v477 = vunpack.c.l.b16 %v344
      %v478 = vunpack.c.l.b16 %v345
      %v479 = vunpack.c.l.b16 %v346
      %v480 = vunpack.c.l.b16 %v347
      %v481 = vunpack.c.l.b16 %v348
      %v482 = vunpack.c.l.b16 %v349
      %v483 = vunpack.c.l.b16 %v350
      %v484 = vunpack.c.l.b16 %v351
      %v485 = vunpack.c.l.b16 %v352
      %v486 = vunpack.c.l.b16 %v353
      %v487 = vunpack.c.l.b16 %v354
      %v488 = vunpack.c.l.b16 %v355
      %v489 = vunpack.c.l.b16 %v356
      %v490 = vunpack.c.l.b16 %v357
      %v491 = vunpack.c.l.b16 %v358
      %v492 = vunpack.c.l.b16 %v359
      %v493 = vunpack.c.l.b16 %v360
      %v494 = vunpack.c.l.b16 %v361
      %v495 = vunpack.c.l.b16 %v362
      %v496 = vunpack.c.l.b16 %v363
      %v497 = vunpack.c.l.b16 %v364
      %v498 = vunpack.c.l.b16 %v365
      %v499 = vunpack.c.l.b16 %v366
      %v500 = vunpack.c.l.b16 %v367
      %v501 = vunpack.c.l.b16 %v368
      %v502 = vunpack.c.l.b16 %v369
      %v503 = vunpack.c.l.b16 %v370
      %v504 = vunpack.c.l.b16 %v371
      %v505 = vunpack.c.l.b16 %v372
      %v506 = vunpack.c.l.b16 %v373
      %v507 = vunpack.c.l.b16 %v374
      %v508 = vunpack.c.l.b16 %v375
      %v509 = vunpack.c.l.b16 %v376
      %v510 = vunpack.c.l.b16 %v377
      %v511 = vunpack.c.l.b16 %v378
      %v512 = vunpack.c.l.b16 %v379
      %v513 = vunpack.c.l.b16 %v380
      %v514 = vunpack.c.l.b16 %v381
      %v515 = vunpack.c.l.b16 %v382
      %v516 = vunpack.c.l.b16 %v383
      %v517 = vunpack.c.l.b16 %v384
      %v518 = vunpack.c.l.b16 %v385
      %v519 = vunpack.c.l.b16 %v386
      %v520 = vunpack.c.l.b16 %v387
      %v521 = vunpack.c.l.b16 %v388
      %v522 = vunpack.c.l.b16 %v389
      %v523 = vunpack.c.l.b16 %v390
      %v524 = vunpack.c.l.b16 %v391
      %v525 = vunpack.c.l.b16 %v392
      %v526 = vunpack.c.l.b16 %v393
      %v527 = vpack.c.b16 %v464, %v463
      %v528 = vpack.c.b16 %v466, %v465
      %v529 = vpack.c.b16 %v468, %v467
      %v530 = vpack.c.b16 %v470, %v469
      %v531 = vpack.c.b16 %v472, %v471
      %v532 = vpack.c.b16 %v474, %v473
      %v533 = vpack.c.b16 %v476, %v475
      %v534 = vpack.c.b16 %v478, %v477
      %v535 = vpack.c.b16 %v480, %v479
      %v536 = vpack.c.b16 %v482, %v481
      %v537 = vpack.c.b16 %v484, %v483
      %v538 = vpack.c.b16 %v486, %v485
      %v539 = vpack.c.b16 %v488, %v487
      %v540 = vpack.c.b16 %v490, %v489
      %v541 = vpack.c.b16 %v492, %v491
      %v542 = vpack.c.b16 %v494, %v493
      %v543 = vpack.c.b16 %v496, %v495
      %v544 = vpack.c.b16 %v498, %v497
      %v545 = vpack.c.b16 %v500, %v499
      %v546 = vpack.c.b16 %v502, %v501
      %v547 = vpack.c.b16 %v504, %v503
      %v548 = vpack.c.b16 %v506, %v505
      %v549 = vpack.c.b16 %v508, %v507
      %v550 = vpack.c.b16 %v510, %v509
      %v551 = vpack.c.b16 %v512, %v511
      %v552 = vpack.c.b16 %v514, %v513
      %v553 = vpack.c.b16 %v516, %v515
      %v554 = vpack.c.b16 %v518, %v517
      %v555 = vpack.c.b16 %v520, %v519
      %v556 = vpack.c.b16 %v522, %v521
      %v557 = vpack.c.b16 %v524, %v523
      %v558 = vpack.c.b16 %v526, %v525
      %vm559 = vcmask 48128
      %v561 = vsel %vm559, %v527, 0
      %v564 = vsel %vm559, %v528, 0
      %v567 = vsel %vm559, %v529, 0
      %v570 = vsel %vm559, %v530, 0
      %v573 = vsel %vm559, %v531, 0
      %v576 = vsel %vm559, %v532, 0
      %v579 = vsel %vm559, %v533, 0
      %v582 = vsel %vm559, %v534, 0
      %v585 = vsel %vm559, %v535, 0
      %v588 = vsel %vm559, %v536, 0
      %v591 = vsel %vm559, %v537, 0
      %v594 = vsel %vm559, %v538, 0
      %v597 = vsel %vm559, %v539, 0
      %v600 = vsel %vm559, %v540, 0
      %v603 = vsel %vm559, %v541, 0
      %v606 = vsel %vm559, %v542, 0
      %v609 = vsel %vm559, %v543, 0
      %v612 = vsel %vm559, %v544, 0
      %v615 = vsel %vm559, %v545, 0
      %v618 = vsel %vm559, %v546, 0
      %v621 = vsel %vm559, %v547, 0
      %v624 = vsel %vm559, %v548, 0
      %v627 = vsel %vm559, %v549, 0
      %v630 = vsel %vm559, %v550, 0
      %v633 = vsel %vm559, %v551, 0
      %v636 = vsel %vm559, %v552, 0
      %v639 = vsel %vm559, %v553, 0
      %v642 = vsel %vm559, %v554, 0
      %v645 = vsel %vm559, %v555, 0
      %v648 = vsel %vm559, %v556, 0
      %v651 = vsel %vm559, %v557, 0
      %v654 = vsel %vm559, %v558, 0
      %vm656 = vcmask 1042432
      %v658 = vsel %vm656, %v394, 0
      %660 = vmatpush.bf16.msra.mxu0 0
      %661 = vmatpush.bf16.msra.mxu0 0
      %662 = vmatpush.bf16.msra.mxu0 0
      %663 = vmatpush.bf16.msra.mxu0 0
      %664 = vmatpush.bf16.msra.mxu0 0
      %665 = vmatpush.bf16.msra.mxu0 0
      %666 = vmatpush.bf16.msra.mxu0 0
      %667 = vmatpush.bf16.msra.mxu0 %v658
      %668 = vmatmul.bf16.gmra.mxu0 %v561
      %v669 = vpop.f32.mrf.mxu0
      %v670 = vadd.f32 %v397, %v669
      %v671 = vpop.f32.mrf.mxu0
      %v672 = vadd.f32 %v397, %v671
      %673 = vmatmul.bf16.gmra.mxu0 %v564
      %v674 = vpop.f32.mrf.mxu0
      %v675 = vadd.f32 %v397, %v674
      %v676 = vpop.f32.mrf.mxu0
      %v677 = vadd.f32 %v397, %v676
      %678 = vmatmul.bf16.gmra.mxu0 %v567
      %v679 = vpop.f32.mrf.mxu0
      %v680 = vadd.f32 %v397, %v679
      %v681 = vpop.f32.mrf.mxu0
      %v682 = vadd.f32 %v397, %v681
      %683 = vmatmul.bf16.gmra.mxu0 %v570
      %v684 = vpop.f32.mrf.mxu0
      %v685 = vadd.f32 %v397, %v684
      %v686 = vpop.f32.mrf.mxu0
      %v687 = vadd.f32 %v397, %v686
      %688 = vmatmul.bf16.gmra.mxu0 %v573
      %v689 = vpop.f32.mrf.mxu0
      %v690 = vadd.f32 %v397, %v689
      %v691 = vpop.f32.mrf.mxu0
      %v692 = vadd.f32 %v397, %v691
      %693 = vmatmul.bf16.gmra.mxu0 %v576
      %v694 = vpop.f32.mrf.mxu0
      %v695 = vadd.f32 %v397, %v694
      %v696 = vpop.f32.mrf.mxu0
      %v697 = vadd.f32 %v397, %v696
      %698 = vmatmul.bf16.gmra.mxu0 %v579
      %v699 = vpop.f32.mrf.mxu0
      %v700 = vadd.f32 %v397, %v699
      %v701 = vpop.f32.mrf.mxu0
      %v702 = vadd.f32 %v397, %v701
      %703 = vmatmul.bf16.gmra.mxu0 %v582
      %v704 = vpop.f32.mrf.mxu0
      %v705 = vadd.f32 %v397, %v704
      %v706 = vpop.f32.mrf.mxu0
      %v707 = vadd.f32 %v397, %v706
      %708 = vmatmul.bf16.gmra.mxu0 %v585
      %v709 = vpop.f32.mrf.mxu0
      %v710 = vadd.f32 %v397, %v709
      %v711 = vpop.f32.mrf.mxu0
      %v712 = vadd.f32 %v397, %v711
      %713 = vmatmul.bf16.gmra.mxu0 %v588
      %v714 = vpop.f32.mrf.mxu0
      %v715 = vadd.f32 %v397, %v714
      %v716 = vpop.f32.mrf.mxu0
      %v717 = vadd.f32 %v397, %v716
      %718 = vmatmul.bf16.gmra.mxu0 %v591
      %v719 = vpop.f32.mrf.mxu0
      %v720 = vadd.f32 %v397, %v719
      %v721 = vpop.f32.mrf.mxu0
      %v722 = vadd.f32 %v397, %v721
      %723 = vmatmul.bf16.gmra.mxu0 %v594
      %v724 = vpop.f32.mrf.mxu0
      %v725 = vadd.f32 %v397, %v724
      %v726 = vpop.f32.mrf.mxu0
      %v727 = vadd.f32 %v397, %v726
      %728 = vmatmul.bf16.gmra.mxu0 %v597
      %v729 = vpop.f32.mrf.mxu0
      %v730 = vadd.f32 %v397, %v729
      %v731 = vpop.f32.mrf.mxu0
      %v732 = vadd.f32 %v397, %v731
      %733 = vmatmul.bf16.gmra.mxu0 %v600
      %v734 = vpop.f32.mrf.mxu0
      %v735 = vadd.f32 %v397, %v734
      %v736 = vpop.f32.mrf.mxu0
      %v737 = vadd.f32 %v397, %v736
      %738 = vmatmul.bf16.gmra.mxu0 %v603
      %v739 = vpop.f32.mrf.mxu0
      %v740 = vadd.f32 %v397, %v739
      %v741 = vpop.f32.mrf.mxu0
      %v742 = vadd.f32 %v397, %v741
      %743 = vmatmul.bf16.gmra.mxu0 %v606
      %v744 = vpop.f32.mrf.mxu0
      %v745 = vadd.f32 %v397, %v744
      %v746 = vpop.f32.mrf.mxu0
      %v747 = vadd.f32 %v397, %v746
      %748 = vmatmul.bf16.gmra.mxu0 %v609
      %v749 = vpop.f32.mrf.mxu0
      %v750 = vadd.f32 %v397, %v749
      %v751 = vpop.f32.mrf.mxu0
      %v752 = vadd.f32 %v397, %v751
      %753 = vmatmul.bf16.gmra.mxu0 %v612
      %v754 = vpop.f32.mrf.mxu0
      %v755 = vadd.f32 %v397, %v754
      %v756 = vpop.f32.mrf.mxu0
      %v757 = vadd.f32 %v397, %v756
      %758 = vmatmul.bf16.gmra.mxu0 %v615
      %v759 = vpop.f32.mrf.mxu0
      %v760 = vadd.f32 %v397, %v759
      %v761 = vpop.f32.mrf.mxu0
      %v762 = vadd.f32 %v397, %v761
      %763 = vmatmul.bf16.gmra.mxu0 %v618
      %v764 = vpop.f32.mrf.mxu0
      %v765 = vadd.f32 %v397, %v764
      %v766 = vpop.f32.mrf.mxu0
      %v767 = vadd.f32 %v397, %v766
      %768 = vmatmul.bf16.gmra.mxu0 %v621
      %v769 = vpop.f32.mrf.mxu0
      %v770 = vadd.f32 %v397, %v769
      %v771 = vpop.f32.mrf.mxu0
      %v772 = vadd.f32 %v397, %v771
      %773 = vmatmul.bf16.gmra.mxu0 %v624
      %v774 = vpop.f32.mrf.mxu0
      %v775 = vadd.f32 %v397, %v774
      %v776 = vpop.f32.mrf.mxu0
      %v777 = vadd.f32 %v397, %v776
      %778 = vmatmul.bf16.gmra.mxu0 %v627
      %v779 = vpop.f32.mrf.mxu0
      %v780 = vadd.f32 %v397, %v779
      %v781 = vpop.f32.mrf.mxu0
      %v782 = vadd.f32 %v397, %v781
      %783 = vmatmul.bf16.gmra.mxu0 %v630
      %v784 = vpop.f32.mrf.mxu0
      %v785 = vadd.f32 %v397, %v784
      %v786 = vpop.f32.mrf.mxu0
      %v787 = vadd.f32 %v397, %v786
      %788 = vmatmul.bf16.gmra.mxu0 %v633
      %v789 = vpop.f32.mrf.mxu0
      %v790 = vadd.f32 %v397, %v789
      %v791 = vpop.f32.mrf.mxu0
      %v792 = vadd.f32 %v397, %v791
      %793 = vmatmul.bf16.gmra.mxu0 %v636
      %v794 = vpop.f32.mrf.mxu0
      %v795 = vadd.f32 %v397, %v794
      %v796 = vpop.f32.mrf.mxu0
      %v797 = vadd.f32 %v397, %v796
      %798 = vmatmul.bf16.gmra.mxu0 %v639
      %v799 = vpop.f32.mrf.mxu0
      %v800 = vadd.f32 %v397, %v799
      %v801 = vpop.f32.mrf.mxu0
      %v802 = vadd.f32 %v397, %v801
      %803 = vmatmul.bf16.gmra.mxu0 %v642
      %v804 = vpop.f32.mrf.mxu0
      %v805 = vadd.f32 %v397, %v804
      %v806 = vpop.f32.mrf.mxu0
      %v807 = vadd.f32 %v397, %v806
      %808 = vmatmul.bf16.gmra.mxu0 %v645
      %v809 = vpop.f32.mrf.mxu0
      %v810 = vadd.f32 %v397, %v809
      %v811 = vpop.f32.mrf.mxu0
      %v812 = vadd.f32 %v397, %v811
      %813 = vmatmul.bf16.gmra.mxu0 %v648
      %v814 = vpop.f32.mrf.mxu0
      %v815 = vadd.f32 %v397, %v814
      %v816 = vpop.f32.mrf.mxu0
      %v817 = vadd.f32 %v397, %v816
      %818 = vmatmul.bf16.gmra.mxu0 %v651
      %v819 = vpop.f32.mrf.mxu0
      %v820 = vadd.f32 %v397, %v819
      %v821 = vpop.f32.mrf.mxu0
      %v822 = vadd.f32 %v397, %v821
      %823 = vmatmul.bf16.gmra.mxu0 %v654
      %v824 = vpop.f32.mrf.mxu0
      %v825 = vadd.f32 %v397, %v824
      %v826 = vpop.f32.mrf.mxu0
      %v827 = vadd.f32 %v397, %v826
      %828 = vdwg.mxu0
      %v829 = vmax.f32 %v670, 0.0
      %v830 = vmax.f32 %v672, 0.0
      %v831 = vmax.f32 %v675, 0.0
      %v832 = vmax.f32 %v677, 0.0
      %v833 = vmax.f32 %v680, 0.0
      %v834 = vmax.f32 %v682, 0.0
      %v835 = vmax.f32 %v685, 0.0
      %v836 = vmax.f32 %v687, 0.0
      %v837 = vmax.f32 %v690, 0.0
      %v838 = vmax.f32 %v692, 0.0
      %v839 = vmax.f32 %v695, 0.0
      %v840 = vmax.f32 %v697, 0.0
      %v841 = vmax.f32 %v700, 0.0
      %v842 = vmax.f32 %v702, 0.0
      %v843 = vmax.f32 %v705, 0.0
      %v844 = vmax.f32 %v707, 0.0
      %v845 = vmax.f32 %v710, 0.0
      %v846 = vmax.f32 %v712, 0.0
      %v847 = vmax.f32 %v715, 0.0
      %v848 = vmax.f32 %v717, 0.0
      %v849 = vmax.f32 %v720, 0.0
      %v850 = vmax.f32 %v722, 0.0
      %v851 = vmax.f32 %v725, 0.0
      %v852 = vmax.f32 %v727, 0.0
      %v853 = vmax.f32 %v730, 0.0
      %v854 = vmax.f32 %v732, 0.0
      %v855 = vmax.f32 %v735, 0.0
      %v856 = vmax.f32 %v737, 0.0
      %v857 = vmax.f32 %v740, 0.0
      %v858 = vmax.f32 %v742, 0.0
      %v859 = vmax.f32 %v745, 0.0
      %v860 = vmax.f32 %v747, 0.0
      %v861 = vmax.f32 %v750, 0.0
      %v862 = vmax.f32 %v752, 0.0
      %v863 = vmax.f32 %v755, 0.0
      %v864 = vmax.f32 %v757, 0.0
      %v865 = vmax.f32 %v760, 0.0
      %v866 = vmax.f32 %v762, 0.0
      %v867 = vmax.f32 %v765, 0.0
      %v868 = vmax.f32 %v767, 0.0
      %v869 = vmax.f32 %v770, 0.0
      %v870 = vmax.f32 %v772, 0.0
      %v871 = vmax.f32 %v775, 0.0
      %v872 = vmax.f32 %v777, 0.0
      %v873 = vmax.f32 %v780, 0.0
      %v874 = vmax.f32 %v782, 0.0
      %v875 = vmax.f32 %v785, 0.0
      %v876 = vmax.f32 %v787, 0.0
      %v877 = vmax.f32 %v790, 0.0
      %v878 = vmax.f32 %v792, 0.0
      %v879 = vmax.f32 %v795, 0.0
      %v880 = vmax.f32 %v797, 0.0
      %v881 = vmax.f32 %v800, 0.0
      %v882 = vmax.f32 %v802, 0.0
      %v883 = vmax.f32 %v805, 0.0
      %v884 = vmax.f32 %v807, 0.0
      %v885 = vmax.f32 %v810, 0.0
      %v886 = vmax.f32 %v812, 0.0
      %v887 = vmax.f32 %v815, 0.0
      %v888 = vmax.f32 %v817, 0.0
      %v889 = vmax.f32 %v820, 0.0
      %v890 = vmax.f32 %v822, 0.0
      %v891 = vmax.f32 %v825, 0.0
      %v892 = vmax.f32 %v827, 0.0
      %v893 = vpack.c.bf16 %v830, %v829
      %v894 = vpack.c.bf16 %v832, %v831
      %v895 = vpack.c.bf16 %v834, %v833
      %v896 = vpack.c.bf16 %v836, %v835
      %v897 = vpack.c.bf16 %v838, %v837
      %v898 = vpack.c.bf16 %v840, %v839
      %v899 = vpack.c.bf16 %v842, %v841
      %v900 = vpack.c.bf16 %v844, %v843
      %v901 = vpack.c.bf16 %v846, %v845
      %v902 = vpack.c.bf16 %v848, %v847
      %v903 = vpack.c.bf16 %v850, %v849
      %v904 = vpack.c.bf16 %v852, %v851
      %v905 = vpack.c.bf16 %v854, %v853
      %v906 = vpack.c.bf16 %v856, %v855
      %v907 = vpack.c.bf16 %v858, %v857
      %v908 = vpack.c.bf16 %v860, %v859
      %v909 = vpack.c.bf16 %v862, %v861
      %v910 = vpack.c.bf16 %v864, %v863
      %v911 = vpack.c.bf16 %v866, %v865
      %v912 = vpack.c.bf16 %v868, %v867
      %v913 = vpack.c.bf16 %v870, %v869
      %v914 = vpack.c.bf16 %v872, %v871
      %v915 = vpack.c.bf16 %v874, %v873
      %v916 = vpack.c.bf16 %v876, %v875
      %v917 = vpack.c.bf16 %v878, %v877
      %v918 = vpack.c.bf16 %v880, %v879
      %v919 = vpack.c.bf16 %v882, %v881
      %v920 = vpack.c.bf16 %v884, %v883
      %v921 = vpack.c.bf16 %v886, %v885
      %v922 = vpack.c.bf16 %v888, %v887
      %v923 = vpack.c.bf16 %v890, %v889
      %v924 = vpack.c.bf16 %v892, %v891
      %v925 = vld [vmem:[%s315] sm:$0xf]
      %v926 = vld [vmem:[%s315 + $0x4] sm:$0xf]
      %v927 = vld [vmem:[%s318] sm:$0x1]
      %v929 = vperm.slane %v927, 0
      %v933 = vunpack.c.l.b16 %v925
      %v934 = vunpack.c.l.b16 %v926
      %v935 = vpack.c.b16 %v934, %v933
      %vm937 = vcmask 130048
      %v939 = vsel %vm937, %v893, 0
      %v942 = vsel %vm937, %v894, 0
      %v945 = vsel %vm937, %v895, 0
      %v948 = vsel %vm937, %v896, 0
      %v951 = vsel %vm937, %v897, 0
      %v954 = vsel %vm937, %v898, 0
      %v957 = vsel %vm937, %v899, 0
      %v960 = vsel %vm937, %v900, 0
      %v963 = vsel %vm937, %v901, 0
      %v966 = vsel %vm937, %v902, 0
      %v969 = vsel %vm937, %v903, 0
      %v972 = vsel %vm937, %v904, 0
      %v975 = vsel %vm937, %v905, 0
      %v978 = vsel %vm937, %v906, 0
      %v981 = vsel %vm937, %v907, 0
      %v984 = vsel %vm937, %v908, 0
      %v987 = vsel %vm937, %v909, 0
      %v990 = vsel %vm937, %v910, 0
      %v993 = vsel %vm937, %v911, 0
      %v996 = vsel %vm937, %v912, 0
      %v999 = vsel %vm937, %v913, 0
      %v1002 = vsel %vm937, %v914, 0
      %v1005 = vsel %vm937, %v915, 0
      %v1008 = vsel %vm937, %v916, 0
      %v1011 = vsel %vm937, %v917, 0
      %v1014 = vsel %vm937, %v918, 0
      %v1017 = vsel %vm937, %v919, 0
      %v1020 = vsel %vm937, %v920, 0
      %v1023 = vsel %vm937, %v921, 0
      %v1026 = vsel %vm937, %v922, 0
      %v1029 = vsel %vm937, %v923, 0
      %v1032 = vsel %vm937, %v924, 0
      %1034 = vmatpush.bf16.msra.mxu0 0
      %1035 = vmatpush.bf16.msra.mxu0 0
      %1036 = vmatpush.bf16.msra.mxu0 0
      %1037 = vmatpush.bf16.msra.mxu0 0
      %1038 = vmatpush.bf16.msra.mxu0 0
      %1039 = vmatpush.bf16.msra.mxu0 0
      %1040 = vmatpush.bf16.msra.mxu0 0
      %1041 = vmatpush.bf16.msra.mxu0 %v935
      %1042 = vmatmul.bf16.gmra.mxu0 %v939
      %v1043 = vpop.f32.mrf.mxu0
      %v1044 = vadd.f32 %v929, %v1043
      %v1045 = vpop.f32.mrf.mxu0
      %v1046 = vadd.f32 %v929, %v1045
      %1047 = vmatmul.bf16.gmra.mxu0 %v942
      %v1048 = vpop.f32.mrf.mxu0
      %v1049 = vadd.f32 %v929, %v1048
      %v1050 = vpop.f32.mrf.mxu0
      %v1051 = vadd.f32 %v929, %v1050
      %1052 = vmatmul.bf16.gmra.mxu0 %v945
      %v1053 = vpop.f32.mrf.mxu0
      %v1054 = vadd.f32 %v929, %v1053
      %v1055 = vpop.f32.mrf.mxu0
      %v1056 = vadd.f32 %v929, %v1055
      %1057 = vmatmul.bf16.gmra.mxu0 %v948
      %v1058 = vpop.f32.mrf.mxu0
      %v1059 = vadd.f32 %v929, %v1058
      %v1060 = vpop.f32.mrf.mxu0
      %v1061 = vadd.f32 %v929, %v1060
      %1062 = vmatmul.bf16.gmra.mxu0 %v951
      %v1063 = vpop.f32.mrf.mxu0
      %v1064 = vadd.f32 %v929, %v1063
      %v1065 = vpop.f32.mrf.mxu0
      %v1066 = vadd.f32 %v929, %v1065
      %1067 = vmatmul.bf16.gmra.mxu0 %v954
      %v1068 = vpop.f32.mrf.mxu0
      %v1069 = vadd.f32 %v929, %v1068
      %v1070 = vpop.f32.mrf.mxu0
      %v1071 = vadd.f32 %v929, %v1070
      %1072 = vmatmul.bf16.gmra.mxu0 %v957
      %v1073 = vpop.f32.mrf.mxu0
      %v1074 = vadd.f32 %v929, %v1073
      %v1075 = vpop.f32.mrf.mxu0
      %v1076 = vadd.f32 %v929, %v1075
      %1077 = vmatmul.bf16.gmra.mxu0 %v960
      %v1078 = vpop.f32.mrf.mxu0
      %v1079 = vadd.f32 %v929, %v1078
      %v1080 = vpop.f32.mrf.mxu0
      %v1081 = vadd.f32 %v929, %v1080
      %1082 = vmatmul.bf16.gmra.mxu0 %v963
      %v1083 = vpop.f32.mrf.mxu0
      %v1084 = vadd.f32 %v929, %v1083
      %v1085 = vpop.f32.mrf.mxu0
      %v1086 = vadd.f32 %v929, %v1085
      %1087 = vmatmul.bf16.gmra.mxu0 %v966
      %v1088 = vpop.f32.mrf.mxu0
      %v1089 = vadd.f32 %v929, %v1088
      %v1090 = vpop.f32.mrf.mxu0
      %v1091 = vadd.f32 %v929, %v1090
      %1092 = vmatmul.bf16.gmra.mxu0 %v969
      %v1093 = vpop.f32.mrf.mxu0
      %v1094 = vadd.f32 %v929, %v1093
      %v1095 = vpop.f32.mrf.mxu0
      %v1096 = vadd.f32 %v929, %v1095
      %1097 = vmatmul.bf16.gmra.mxu0 %v972
      %v1098 = vpop.f32.mrf.mxu0
      %v1099 = vadd.f32 %v929, %v1098
      %v1100 = vpop.f32.mrf.mxu0
      %v1101 = vadd.f32 %v929, %v1100
      %1102 = vmatmul.bf16.gmra.mxu0 %v975
      %v1103 = vpop.f32.mrf.mxu0
      %v1104 = vadd.f32 %v929, %v1103
      %v1105 = vpop.f32.mrf.mxu0
      %v1106 = vadd.f32 %v929, %v1105
      %1107 = vmatmul.bf16.gmra.mxu0 %v978
      %v1108 = vpop.f32.mrf.mxu0
      %v1109 = vadd.f32 %v929, %v1108
      %v1110 = vpop.f32.mrf.mxu0
      %v1111 = vadd.f32 %v929, %v1110
      %1112 = vmatmul.bf16.gmra.mxu0 %v981
      %v1113 = vpop.f32.mrf.mxu0
      %v1114 = vadd.f32 %v929, %v1113
      %v1115 = vpop.f32.mrf.mxu0
      %v1116 = vadd.f32 %v929, %v1115
      %1117 = vmatmul.bf16.gmra.mxu0 %v984
      %v1118 = vpop.f32.mrf.mxu0
      %v1119 = vadd.f32 %v929, %v1118
      %v1120 = vpop.f32.mrf.mxu0
      %v1121 = vadd.f32 %v929, %v1120
      %1122 = vmatmul.bf16.gmra.mxu0 %v987
      %v1123 = vpop.f32.mrf.mxu0
      %v1124 = vadd.f32 %v929, %v1123
      %v1125 = vpop.f32.mrf.mxu0
      %v1126 = vadd.f32 %v929, %v1125
      %1127 = vmatmul.bf16.gmra.mxu0 %v990
      %v1128 = vpop.f32.mrf.mxu0
      %v1129 = vadd.f32 %v929, %v1128
      %v1130 = vpop.f32.mrf.mxu0
      %v1131 = vadd.f32 %v929, %v1130
      %1132 = vmatmul.bf16.gmra.mxu0 %v993
      %v1133 = vpop.f32.mrf.mxu0
      %v1134 = vadd.f32 %v929, %v1133
      %v1135 = vpop.f32.mrf.mxu0
      %v1136 = vadd.f32 %v929, %v1135
      %1137 = vmatmul.bf16.gmra.mxu0 %v996
      %v1138 = vpop.f32.mrf.mxu0
      %v1139 = vadd.f32 %v929, %v1138
      %v1140 = vpop.f32.mrf.mxu0
      %v1141 = vadd.f32 %v929, %v1140
      %1142 = vmatmul.bf16.gmra.mxu0 %v999
      %v1143 = vpop.f32.mrf.mxu0
      %v1144 = vadd.f32 %v929, %v1143
      %v1145 = vpop.f32.mrf.mxu0
      %v1146 = vadd.f32 %v929, %v1145
      %1147 = vmatmul.bf16.gmra.mxu0 %v1002
      %v1148 = vpop.f32.mrf.mxu0
      %v1149 = vadd.f32 %v929, %v1148
      %v1150 = vpop.f32.mrf.mxu0
      %v1151 = vadd.f32 %v929, %v1150
      %1152 = vmatmul.bf16.gmra.mxu0 %v1005
      %v1153 = vpop.f32.mrf.mxu0
      %v1154 = vadd.f32 %v929, %v1153
      %v1155 = vpop.f32.mrf.mxu0
      %v1156 = vadd.f32 %v929, %v1155
      %1157 = vmatmul.bf16.gmra.mxu0 %v1008
      %v1158 = vpop.f32.mrf.mxu0
      %v1159 = vadd.f32 %v929, %v1158
      %v1160 = vpop.f32.mrf.mxu0
      %v1161 = vadd.f32 %v929, %v1160
      %1162 = vmatmul.bf16.gmra.mxu0 %v1011
      %v1163 = vpop.f32.mrf.mxu0
      %v1164 = vadd.f32 %v929, %v1163
      %v1165 = vpop.f32.mrf.mxu0
      %v1166 = vadd.f32 %v929, %v1165
      %1167 = vmatmul.bf16.gmra.mxu0 %v1014
      %v1168 = vpop.f32.mrf.mxu0
      %v1169 = vadd.f32 %v929, %v1168
      %v1170 = vpop.f32.mrf.mxu0
      %v1171 = vadd.f32 %v929, %v1170
      %1172 = vmatmul.bf16.gmra.mxu0 %v1017
      %v1173 = vpop.f32.mrf.mxu0
      %v1174 = vadd.f32 %v929, %v1173
      %v1175 = vpop.f32.mrf.mxu0
      %v1176 = vadd.f32 %v929, %v1175
      %1177 = vmatmul.bf16.gmra.mxu0 %v1020
      %v1178 = vpop.f32.mrf.mxu0
      %v1179 = vadd.f32 %v929, %v1178
      %v1180 = vpop.f32.mrf.mxu0
      %v1181 = vadd.f32 %v929, %v1180
      %1182 = vmatmul.bf16.gmra.mxu0 %v1023
      %v1183 = vpop.f32.mrf.mxu0
      %v1184 = vadd.f32 %v929, %v1183
      %v1185 = vpop.f32.mrf.mxu0
      %v1186 = vadd.f32 %v929, %v1185
      %1187 = vmatmul.bf16.gmra.mxu0 %v1026
      %v1188 = vpop.f32.mrf.mxu0
      %v1189 = vadd.f32 %v929, %v1188
      %v1190 = vpop.f32.mrf.mxu0
      %v1191 = vadd.f32 %v929, %v1190
      %1192 = vmatmul.bf16.gmra.mxu0 %v1029
      %v1193 = vpop.f32.mrf.mxu0
      %v1194 = vadd.f32 %v929, %v1193
      %v1195 = vpop.f32.mrf.mxu0
      %v1196 = vadd.f32 %v929, %v1195
      %1197 = vmatmul.bf16.gmra.mxu0 %v1032
      %v1198 = vpop.f32.mrf.mxu0
      %v1199 = vadd.f32 %v929, %v1198
      %v1200 = vpop.f32.mrf.mxu0
      %v1201 = vadd.f32 %v929, %v1200
      %1202 = vdwg.mxu0
      %v1203 = vmax.f32 %v1044, 0.0
      %v1204 = vmax.f32 %v1046, 0.0
      %v1205 = vmax.f32 %v1049, 0.0
      %v1206 = vmax.f32 %v1051, 0.0
      %v1207 = vmax.f32 %v1054, 0.0
      %v1208 = vmax.f32 %v1056, 0.0
      %v1209 = vmax.f32 %v1059, 0.0
      %v1210 = vmax.f32 %v1061, 0.0
      %v1211 = vmax.f32 %v1064, 0.0
      %v1212 = vmax.f32 %v1066, 0.0
      %v1213 = vmax.f32 %v1069, 0.0
      %v1214 = vmax.f32 %v1071, 0.0
      %v1215 = vmax.f32 %v1074, 0.0
      %v1216 = vmax.f32 %v1076, 0.0
      %v1217 = vmax.f32 %v1079, 0.0
      %v1218 = vmax.f32 %v1081, 0.0
      %v1219 = vmax.f32 %v1084, 0.0
      %v1220 = vmax.f32 %v1086, 0.0
      %v1221 = vmax.f32 %v1089, 0.0
      %v1222 = vmax.f32 %v1091, 0.0
      %v1223 = vmax.f32 %v1094, 0.0
      %v1224 = vmax.f32 %v1096, 0.0
      %v1225 = vmax.f32 %v1099, 0.0
      %v1226 = vmax.f32 %v1101, 0.0
      %v1227 = vmax.f32 %v1104, 0.0
      %v1228 = vmax.f32 %v1106, 0.0
      %v1229 = vmax.f32 %v1109, 0.0
      %v1230 = vmax.f32 %v1111, 0.0
      %v1231 = vmax.f32 %v1114, 0.0
      %v1232 = vmax.f32 %v1116, 0.0
      %v1233 = vmax.f32 %v1119, 0.0
      %v1234 = vmax.f32 %v1121, 0.0
      %v1235 = vmax.f32 %v1124, 0.0
      %v1236 = vmax.f32 %v1126, 0.0
      %v1237 = vmax.f32 %v1129, 0.0
      %v1238 = vmax.f32 %v1131, 0.0
      %v1239 = vmax.f32 %v1134, 0.0
      %v1240 = vmax.f32 %v1136, 0.0
      %v1241 = vmax.f32 %v1139, 0.0
      %v1242 = vmax.f32 %v1141, 0.0
      %v1243 = vmax.f32 %v1144, 0.0
      %v1244 = vmax.f32 %v1146, 0.0
      %v1245 = vmax.f32 %v1149, 0.0
      %v1246 = vmax.f32 %v1151, 0.0
      %v1247 = vmax.f32 %v1154, 0.0
      %v1248 = vmax.f32 %v1156, 0.0
      %v1249 = vmax.f32 %v1159, 0.0
      %v1250 = vmax.f32 %v1161, 0.0
      %v1251 = vmax.f32 %v1164, 0.0
      %v1252 = vmax.f32 %v1166, 0.0
      %v1253 = vmax.f32 %v1169, 0.0
      %v1254 = vmax.f32 %v1171, 0.0
      %v1255 = vmax.f32 %v1174, 0.0
      %v1256 = vmax.f32 %v1176, 0.0
      %v1257 = vmax.f32 %v1179, 0.0
      %v1258 = vmax.f32 %v1181, 0.0
      %v1259 = vmax.f32 %v1184, 0.0
      %v1260 = vmax.f32 %v1186, 0.0
      %v1261 = vmax.f32 %v1189, 0.0
      %v1262 = vmax.f32 %v1191, 0.0
      %v1263 = vmax.f32 %v1194, 0.0
      %v1264 = vmax.f32 %v1196, 0.0
      %v1265 = vmax.f32 %v1199, 0.0
      %v1266 = vmax.f32 %v1201, 0.0
      %vm1267 = vcmask 261120
      %v1268 = vsel %vm1267, %v1203, -inf
      %v1269 = vsel %vm1267, %v1204, -inf
      %v1270 = vmax.f32 %v1268, %v1269
      %v1271 = vrot.slane %v1270, 4
      %v1272 = vmax.f32 %v1270, %v1271
      %v1273 = vrot.slane %v1272, 2
      %v1274 = vmax.f32 %v1272, %v1273
      %v1275 = vrot.slane %v1274, 1
      %v1276 = vmax.f32 %v1274, %v1275
      %v1277 = vsel %vm1267, %v1205, -inf
      %v1278 = vsel %vm1267, %v1206, -inf
      %v1279 = vmax.f32 %v1277, %v1278
      %v1280 = vrot.slane %v1279, 4
      %v1281 = vmax.f32 %v1279, %v1280
      %v1282 = vrot.slane %v1281, 2
      %v1283 = vmax.f32 %v1281, %v1282
      %v1284 = vrot.slane %v1283, 1
      %v1285 = vmax.f32 %v1283, %v1284
      %v1286 = vsel %vm1267, %v1207, -inf
      %v1287 = vsel %vm1267, %v1208, -inf
      %v1288 = vmax.f32 %v1286, %v1287
      %v1289 = vrot.slane %v1288, 4
      %v1290 = vmax.f32 %v1288, %v1289
      %v1291 = vrot.slane %v1290, 2
      %v1292 = vmax.f32 %v1290, %v1291
      %v1293 = vrot.slane %v1292, 1
      %v1294 = vmax.f32 %v1292, %v1293
      %v1295 = vsel %vm1267, %v1209, -inf
      %v1296 = vsel %vm1267, %v1210, -inf
      %v1297 = vmax.f32 %v1295, %v1296
      %v1298 = vrot.slane %v1297, 4
      %v1299 = vmax.f32 %v1297, %v1298
      %v1300 = vrot.slane %v1299, 2
      %v1301 = vmax.f32 %v1299, %v1300
      %v1302 = vrot.slane %v1301, 1
      %v1303 = vmax.f32 %v1301, %v1302
      %v1304 = vsel %vm1267, %v1211, -inf
      %v1305 = vsel %vm1267, %v1212, -inf
      %v1306 = vmax.f32 %v1304, %v1305
      %v1307 = vrot.slane %v1306, 4
      %v1308 = vmax.f32 %v1306, %v1307
      %v1309 = vrot.slane %v1308, 2
      %v1310 = vmax.f32 %v1308, %v1309
      %v1311 = vrot.slane %v1310, 1
      %v1312 = vmax.f32 %v1310, %v1311
      %v1313 = vsel %vm1267, %v1213, -inf
      %v1314 = vsel %vm1267, %v1214, -inf
      %v1315 = vmax.f32 %v1313, %v1314
      %v1316 = vrot.slane %v1315, 4
      %v1317 = vmax.f32 %v1315, %v1316
      %v1318 = vrot.slane %v1317, 2
      %v1319 = vmax.f32 %v1317, %v1318
      %v1320 = vrot.slane %v1319, 1
      %v1321 = vmax.f32 %v1319, %v1320
      %v1322 = vsel %vm1267, %v1215, -inf
      %v1323 = vsel %vm1267, %v1216, -inf
      %v1324 = vmax.f32 %v1322, %v1323
      %v1325 = vrot.slane %v1324, 4
      %v1326 = vmax.f32 %v1324, %v1325
      %v1327 = vrot.slane %v1326, 2
      %v1328 = vmax.f32 %v1326, %v1327
      %v1329 = vrot.slane %v1328, 1
      %v1330 = vmax.f32 %v1328, %v1329
      %v1331 = vsel %vm1267, %v1217, -inf
      %v1332 = vsel %vm1267, %v1218, -inf
      %v1333 = vmax.f32 %v1331, %v1332
      %v1334 = vrot.slane %v1333, 4
      %v1335 = vmax.f32 %v1333, %v1334
      %v1336 = vrot.slane %v1335, 2
      %v1337 = vmax.f32 %v1335, %v1336
      %v1338 = vrot.slane %v1337, 1
      %v1339 = vmax.f32 %v1337, %v1338
      %v1340 = vsel %vm1267, %v1219, -inf
      %v1341 = vsel %vm1267, %v1220, -inf
      %v1342 = vmax.f32 %v1340, %v1341
      %v1343 = vrot.slane %v1342, 4
      %v1344 = vmax.f32 %v1342, %v1343
      %v1345 = vrot.slane %v1344, 2
      %v1346 = vmax.f32 %v1344, %v1345
      %v1347 = vrot.slane %v1346, 1
      %v1348 = vmax.f32 %v1346, %v1347
      %v1349 = vsel %vm1267, %v1221, -inf
      %v1350 = vsel %vm1267, %v1222, -inf
      %v1351 = vmax.f32 %v1349, %v1350
      %v1352 = vrot.slane %v1351, 4
      %v1353 = vmax.f32 %v1351, %v1352
      %v1354 = vrot.slane %v1353, 2
      %v1355 = vmax.f32 %v1353, %v1354
      %v1356 = vrot.slane %v1355, 1
      %v1357 = vmax.f32 %v1355, %v1356
      %v1358 = vsel %vm1267, %v1223, -inf
      %v1359 = vsel %vm1267, %v1224, -inf
      %v1360 = vmax.f32 %v1358, %v1359
      %v1361 = vrot.slane %v1360, 4
      %v1362 = vmax.f32 %v1360, %v1361
      %v1363 = vrot.slane %v1362, 2
      %v1364 = vmax.f32 %v1362, %v1363
      %v1365 = vrot.slane %v1364, 1
      %v1366 = vmax.f32 %v1364, %v1365
      %v1367 = vsel %vm1267, %v1225, -inf
      %v1368 = vsel %vm1267, %v1226, -inf
      %v1369 = vmax.f32 %v1367, %v1368
      %v1370 = vrot.slane %v1369, 4
      %v1371 = vmax.f32 %v1369, %v1370
      %v1372 = vrot.slane %v1371, 2
      %v1373 = vmax.f32 %v1371, %v1372
      %v1374 = vrot.slane %v1373, 1
      %v1375 = vmax.f32 %v1373, %v1374
      %v1376 = vsel %vm1267, %v1227, -inf
      %v1377 = vsel %vm1267, %v1228, -inf
      %v1378 = vmax.f32 %v1376, %v1377
      %v1379 = vrot.slane %v1378, 4
      %v1380 = vmax.f32 %v1378, %v1379
      %v1381 = vrot.slane %v1380, 2
      %v1382 = vmax.f32 %v1380, %v1381
      %v1383 = vrot.slane %v1382, 1
      %v1384 = vmax.f32 %v1382, %v1383
      %v1385 = vsel %vm1267, %v1229, -inf
      %v1386 = vsel %vm1267, %v1230, -inf
      %v1387 = vmax.f32 %v1385, %v1386
      %v1388 = vrot.slane %v1387, 4
      %v1389 = vmax.f32 %v1387, %v1388
      %v1390 = vrot.slane %v1389, 2
      %v1391 = vmax.f32 %v1389, %v1390
      %v1392 = vrot.slane %v1391, 1
      %v1393 = vmax.f32 %v1391, %v1392
      %v1394 = vsel %vm1267, %v1231, -inf
      %v1395 = vsel %vm1267, %v1232, -inf
      %v1396 = vmax.f32 %v1394, %v1395
      %v1397 = vrot.slane %v1396, 4
      %v1398 = vmax.f32 %v1396, %v1397
      %v1399 = vrot.slane %v1398, 2
      %v1400 = vmax.f32 %v1398, %v1399
      %v1401 = vrot.slane %v1400, 1
      %v1402 = vmax.f32 %v1400, %v1401
      %v1403 = vsel %vm1267, %v1233, -inf
      %v1404 = vsel %vm1267, %v1234, -inf
      %v1405 = vmax.f32 %v1403, %v1404
      %v1406 = vrot.slane %v1405, 4
      %v1407 = vmax.f32 %v1405, %v1406
      %v1408 = vrot.slane %v1407, 2
      %v1409 = vmax.f32 %v1407, %v1408
      %v1410 = vrot.slane %v1409, 1
      %v1411 = vmax.f32 %v1409, %v1410
      %v1412 = vsel %vm1267, %v1235, -inf
      %v1413 = vsel %vm1267, %v1236, -inf
      %v1414 = vmax.f32 %v1412, %v1413
      %v1415 = vrot.slane %v1414, 4
      %v1416 = vmax.f32 %v1414, %v1415
      %v1417 = vrot.slane %v1416, 2
      %v1418 = vmax.f32 %v1416, %v1417
      %v1419 = vrot.slane %v1418, 1
      %v1420 = vmax.f32 %v1418, %v1419
      %v1421 = vsel %vm1267, %v1237, -inf
      %v1422 = vsel %vm1267, %v1238, -inf
      %v1423 = vmax.f32 %v1421, %v1422
      %v1424 = vrot.slane %v1423, 4
      %v1425 = vmax.f32 %v1423, %v1424
      %v1426 = vrot.slane %v1425, 2
      %v1427 = vmax.f32 %v1425, %v1426
      %v1428 = vrot.slane %v1427, 1
      %v1429 = vmax.f32 %v1427, %v1428
      %v1430 = vsel %vm1267, %v1239, -inf
      %v1431 = vsel %vm1267, %v1240, -inf
      %v1432 = vmax.f32 %v1430, %v1431
      %v1433 = vrot.slane %v1432, 4
      %v1434 = vmax.f32 %v1432, %v1433
      %v1435 = vrot.slane %v1434, 2
      %v1436 = vmax.f32 %v1434, %v1435
      %v1437 = vrot.slane %v1436, 1
      %v1438 = vmax.f32 %v1436, %v1437
      %v1439 = vsel %vm1267, %v1241, -inf
      %v1440 = vsel %vm1267, %v1242, -inf
      %v1441 = vmax.f32 %v1439, %v1440
      %v1442 = vrot.slane %v1441, 4
      %v1443 = vmax.f32 %v1441, %v1442
      %v1444 = vrot.slane %v1443, 2
      %v1445 = vmax.f32 %v1443, %v1444
      %v1446 = vrot.slane %v1445, 1
      %v1447 = vmax.f32 %v1445, %v1446
      %v1448 = vsel %vm1267, %v1243, -inf
      %v1449 = vsel %vm1267, %v1244, -inf
      %v1450 = vmax.f32 %v1448, %v1449
      %v1451 = vrot.slane %v1450, 4
      %v1452 = vmax.f32 %v1450, %v1451
      %v1453 = vrot.slane %v1452, 2
      %v1454 = vmax.f32 %v1452, %v1453
      %v1455 = vrot.slane %v1454, 1
      %v1456 = vmax.f32 %v1454, %v1455
      %v1457 = vsel %vm1267, %v1245, -inf
      %v1458 = vsel %vm1267, %v1246, -inf
      %v1459 = vmax.f32 %v1457, %v1458
      %v1460 = vrot.slane %v1459, 4
      %v1461 = vmax.f32 %v1459, %v1460
      %v1462 = vrot.slane %v1461, 2
      %v1463 = vmax.f32 %v1461, %v1462
      %v1464 = vrot.slane %v1463, 1
      %v1465 = vmax.f32 %v1463, %v1464
      %v1466 = vsel %vm1267, %v1247, -inf
      %v1467 = vsel %vm1267, %v1248, -inf
      %v1468 = vmax.f32 %v1466, %v1467
      %v1469 = vrot.slane %v1468, 4
      %v1470 = vmax.f32 %v1468, %v1469
      %v1471 = vrot.slane %v1470, 2
      %v1472 = vmax.f32 %v1470, %v1471
      %v1473 = vrot.slane %v1472, 1
      %v1474 = vmax.f32 %v1472, %v1473
      %v1475 = vsel %vm1267, %v1249, -inf
      %v1476 = vsel %vm1267, %v1250, -inf
      %v1477 = vmax.f32 %v1475, %v1476
      %v1478 = vrot.slane %v1477, 4
      %v1479 = vmax.f32 %v1477, %v1478
      %v1480 = vrot.slane %v1479, 2
      %v1481 = vmax.f32 %v1479, %v1480
      %v1482 = vrot.slane %v1481, 1
      %v1483 = vmax.f32 %v1481, %v1482
      %v1484 = vsel %vm1267, %v1251, -inf
      %v1485 = vsel %vm1267, %v1252, -inf
      %v1486 = vmax.f32 %v1484, %v1485
      %v1487 = vrot.slane %v1486, 4
      %v1488 = vmax.f32 %v1486, %v1487
      %v1489 = vrot.slane %v1488, 2
      %v1490 = vmax.f32 %v1488, %v1489
      %v1491 = vrot.slane %v1490, 1
      %v1492 = vmax.f32 %v1490, %v1491
      %v1493 = vsel %vm1267, %v1253, -inf
      %v1494 = vsel %vm1267, %v1254, -inf
      %v1495 = vmax.f32 %v1493, %v1494
      %v1496 = vrot.slane %v1495, 4
      %v1497 = vmax.f32 %v1495, %v1496
      %v1498 = vrot.slane %v1497, 2
      %v1499 = vmax.f32 %v1497, %v1498
      %v1500 = vrot.slane %v1499, 1
      %v1501 = vmax.f32 %v1499, %v1500
      %v1502 = vsel %vm1267, %v1255, -inf
      %v1503 = vsel %vm1267, %v1256, -inf
      %v1504 = vmax.f32 %v1502, %v1503
      %v1505 = vrot.slane %v1504, 4
      %v1506 = vmax.f32 %v1504, %v1505
      %v1507 = vrot.slane %v1506, 2
      %v1508 = vmax.f32 %v1506, %v1507
      %v1509 = vrot.slane %v1508, 1
      %v1510 = vmax.f32 %v1508, %v1509
      %v1511 = vsel %vm1267, %v1257, -inf
      %v1512 = vsel %vm1267, %v1258, -inf
      %v1513 = vmax.f32 %v1511, %v1512
      %v1514 = vrot.slane %v1513, 4
      %v1515 = vmax.f32 %v1513, %v1514
      %v1516 = vrot.slane %v1515, 2
      %v1517 = vmax.f32 %v1515, %v1516
      %v1518 = vrot.slane %v1517, 1
      %v1519 = vmax.f32 %v1517, %v1518
      %v1520 = vsel %vm1267, %v1259, -inf
      %v1521 = vsel %vm1267, %v1260, -inf
      %v1522 = vmax.f32 %v1520, %v1521
      %v1523 = vrot.slane %v1522, 4
      %v1524 = vmax.f32 %v1522, %v1523
      %v1525 = vrot.slane %v1524, 2
      %v1526 = vmax.f32 %v1524, %v1525
      %v1527 = vrot.slane %v1526, 1
      %v1528 = vmax.f32 %v1526, %v1527
      %v1529 = vsel %vm1267, %v1261, -inf
      %v1530 = vsel %vm1267, %v1262, -inf
      %v1531 = vmax.f32 %v1529, %v1530
      %v1532 = vrot.slane %v1531, 4
      %v1533 = vmax.f32 %v1531, %v1532
      %v1534 = vrot.slane %v1533, 2
      %v1535 = vmax.f32 %v1533, %v1534
      %v1536 = vrot.slane %v1535, 1
      %v1537 = vmax.f32 %v1535, %v1536
      %v1538 = vsel %vm1267, %v1263, -inf
      %v1539 = vsel %vm1267, %v1264, -inf
      %v1540 = vmax.f32 %v1538, %v1539
      %v1541 = vrot.slane %v1540, 4
      %v1542 = vmax.f32 %v1540, %v1541
      %v1543 = vrot.slane %v1542, 2
      %v1544 = vmax.f32 %v1542, %v1543
      %v1545 = vrot.slane %v1544, 1
      %v1546 = vmax.f32 %v1544, %v1545
      %v1547 = vsel %vm1267, %v1265, -inf
      %v1548 = vsel %vm1267, %v1266, -inf
      %v1549 = vmax.f32 %v1547, %v1548
      %v1550 = vrot.slane %v1549, 4
      %v1551 = vmax.f32 %v1549, %v1550
      %v1552 = vrot.slane %v1551, 2
      %v1553 = vmax.f32 %v1551, %v1552
      %v1554 = vrot.slane %v1553, 1
      %v1555 = vmax.f32 %v1553, %v1554
      %v1556 = vpack.c.bf16 %v1276, %v1276
      %v1557 = vpack.c.bf16 %v1285, %v1285
      %v1558 = vpack.c.bf16 %v1294, %v1294
      %v1559 = vpack.c.bf16 %v1303, %v1303
      %v1560 = vpack.c.bf16 %v1312, %v1312
      %v1561 = vpack.c.bf16 %v1321, %v1321
      %v1562 = vpack.c.bf16 %v1330, %v1330
      %v1563 = vpack.c.bf16 %v1339, %v1339
      %v1564 = vpack.c.bf16 %v1348, %v1348
      %v1565 = vpack.c.bf16 %v1357, %v1357
      %v1566 = vpack.c.bf16 %v1366, %v1366
      %v1567 = vpack.c.bf16 %v1375, %v1375
      %v1568 = vpack.c.bf16 %v1384, %v1384
      %v1569 = vpack.c.bf16 %v1393, %v1393
      %v1570 = vpack.c.bf16 %v1402, %v1402
      %v1571 = vpack.c.bf16 %v1411, %v1411
      %v1572 = vpack.c.bf16 %v1420, %v1420
      %v1573 = vpack.c.bf16 %v1429, %v1429
      %v1574 = vpack.c.bf16 %v1438, %v1438
      %v1575 = vpack.c.bf16 %v1447, %v1447
      %v1576 = vpack.c.bf16 %v1456, %v1456
      %v1577 = vpack.c.bf16 %v1465, %v1465
      %v1578 = vpack.c.bf16 %v1474, %v1474
      %v1579 = vpack.c.bf16 %v1483, %v1483
      %v1580 = vpack.c.bf16 %v1492, %v1492
      %v1581 = vpack.c.bf16 %v1501, %v1501
      %v1582 = vpack.c.bf16 %v1510, %v1510
      %v1583 = vpack.c.bf16 %v1519, %v1519
      %v1584 = vpack.c.bf16 %v1528, %v1528
      %v1585 = vpack.c.bf16 %v1537, %v1537
      %v1586 = vpack.c.bf16 %v1546, %v1546
      %v1587 = vpack.c.bf16 %v1555, %v1555
      %v1620 = vunpack.c.l.b16 %v1556
      %v1621 = vunpack.c.l.b16 %v1557
      %v1622 = vunpack.c.l.b16 %v1558
      %v1623 = vunpack.c.l.b16 %v1559
      %v1624 = vunpack.c.l.b16 %v1560
      %v1625 = vunpack.c.l.b16 %v1561
      %v1626 = vunpack.c.l.b16 %v1562
      %v1627 = vunpack.c.l.b16 %v1563
      %v1628 = vunpack.c.l.b16 %v1564
      %v1629 = vunpack.c.l.b16 %v1565
      %v1630 = vunpack.c.l.b16 %v1566
      %v1631 = vunpack.c.l.b16 %v1567
      %v1632 = vunpack.c.l.b16 %v1568
      %v1633 = vunpack.c.l.b16 %v1569
      %v1634 = vunpack.c.l.b16 %v1570
      %v1635 = vunpack.c.l.b16 %v1571
      %v1636 = vunpack.c.l.b16 %v1572
      %v1637 = vunpack.c.l.b16 %v1573
      %v1638 = vunpack.c.l.b16 %v1574
      %v1639 = vunpack.c.l.b16 %v1575
      %v1640 = vunpack.c.l.b16 %v1576
      %v1641 = vunpack.c.l.b16 %v1577
      %v1642 = vunpack.c.l.b16 %v1578
      %v1643 = vunpack.c.l.b16 %v1579
      %v1644 = vunpack.c.l.b16 %v1580
      %v1645 = vunpack.c.l.b16 %v1581
      %v1646 = vunpack.c.l.b16 %v1582
      %v1647 = vunpack.c.l.b16 %v1583
      %v1648 = vunpack.c.l.b16 %v1584
      %v1649 = vunpack.c.l.b16 %v1585
      %v1650 = vunpack.c.l.b16 %v1586
      %v1651 = vunpack.c.l.b16 %v1587
      %vm1652 = vcmask 1041409
      %v1653 = vsel %vm1652, %v1621, %v1620
      %vm1654 = vcmask 1042434
      %v1655 = vsel %vm1654, %v1622, %v1653
      %vm1656 = vcmask 1043459
      %v1657 = vsel %vm1656, %v1623, %v1655
      %vm1658 = vcmask 1044484
      %v1659 = vsel %vm1658, %v1624, %v1657
      %vm1660 = vcmask 1045509
      %v1661 = vsel %vm1660, %v1625, %v1659
      %vm1662 = vcmask 1046534
      %v1663 = vsel %vm1662, %v1626, %v1661
      %vm1664 = vcmask 1047559
      %v1665 = vsel %vm1664, %v1627, %v1663
      %v1666 = vsel %vm1652, %v1629, %v1628
      %v1667 = vsel %vm1654, %v1630, %v1666
      %v1668 = vsel %vm1656, %v1631, %v1667
      %v1669 = vsel %vm1658, %v1632, %v1668
      %v1670 = vsel %vm1660, %v1633, %v1669
      %v1671 = vsel %vm1662, %v1634, %v1670
      %v1672 = vsel %vm1664, %v1635, %v1671
      %v1673 = vsel %vm1652, %v1637, %v1636
      %v1674 = vsel %vm1654, %v1638, %v1673
      %v1675 = vsel %vm1656, %v1639, %v1674
      %v1676 = vsel %vm1658, %v1640, %v1675
      %v1677 = vsel %vm1660, %v1641, %v1676
      %v1678 = vsel %vm1662, %v1642, %v1677
      %v1679 = vsel %vm1664, %v1643, %v1678
      %v1680 = vsel %vm1652, %v1645, %v1644
      %v1681 = vsel %vm1654, %v1646, %v1680
      %v1682 = vsel %vm1656, %v1647, %v1681
      %v1683 = vsel %vm1658, %v1648, %v1682
      %v1684 = vsel %vm1660, %v1649, %v1683
      %v1685 = vsel %vm1662, %v1650, %v1684
      %v1686 = vsel %vm1664, %v1651, %v1685
      %v1687 = vpack.c.b16 %v1665, %v1665
      %v1688 = vpack.c.b16 %v1672, %v1672
      %v1689 = vpack.c.b16 %v1679, %v1679
      %v1690 = vpack.c.b16 %v1686, %v1686
      %vm1695 = vcmask 257024
      %1696 = vst.msk [vmem:[%s327] sm:$0xf] %vm1695, %v1687
      %1697 = vst.msk [vmem:[%s327 + $0x4] sm:$0xf] %vm1695, %v1688
      %1698 = vst.msk [vmem:[%s327 + $0x8] sm:$0xf] %vm1695, %v1689
      %1699 = vst.msk [vmem:[%s327 + $0xc] sm:$0xf] %vm1695, %v1690
      %s1700 = smul.u32 4, %s21
      %p1701 = scmp.lt.s32.totalorder %s20, 1
      %s1702 = scalar_select %p1701, %s20, 1
      %p1703 = scmp.lt.s32.totalorder %s1700, 3
      %s1704 = scalar_select %p1703, %s1700, 3
      %s1705 = smul.addr %s1702, 4
      %s1706 = sadd.s32 %s1704, %s1705
      %s1707 = smul.addr %s1706, 4
      %s1708 = scalar_lea.vmem %s5, %s1707
      // Predicated region
      $region41: #{a_call__.1} parent=39 // pred_check
        %p1709 = pneg %p180
      $region42: #{a_call__.1} parent=39 // pred_check_branch
        %1711 = sbr.rel (%p1709) target = $region44
      $region43: #{a_call__.1} parent=39 // pred_region
        %s1712 = smul.u32 4, %s21
      $region44: #{a_call__.1} parent=39 // pred_fallthru
        _
    $region40: #{a_call__.1} parent=5 // pred_fallthru
      _
    %p1713 = scmp.le.s32.totalorder 2, %s11
    // Predicated region
    $region45: #{a_call__.1} parent=5 // pred_check
      %p1714 = pneg %p1713
    $region46: #{a_call__.1} parent=5 // pred_check_branch
      %1716 = sbr.rel (%p1714) target = $region48
    $region47: #{a_call__.1} parent=5 // pred_region
      %s1717 = ssub.s32 %s11, 2
      // Predicated region
      $region49: #{a_call__.1} parent=47 // pred_check
        %p1718 = pneg %p186
      $region50: #{a_call__.1} parent=47 // pred_check_branch
        %1720 = sbr.rel (%p1718) target = $region52
      $region51: #{a_call__.1} parent=47 // pred_region
        %s1721 = smul.u32 4, %s23
        %p1722 = scmp.lt.s32.totalorder %s22, 1
        %s1723 = scalar_select %p1722, %s22, 1
        %p1724 = scmp.lt.s32.totalorder %s1721, 3
        %s1725 = scalar_select %p1724, %s1721, 3
        %s1726 = smul.addr %s1723, 4
        %s1727 = sadd.s32 %s1725, %s1726
        %s1728 = smul.addr %s1727, 4
        %s1729 = scalar_lea.vmem %s5, %s1728
      $region52: #{a_call__.1} parent=47 // pred_fallthru
        _
    $region48: #{a_call__.1} parent=5 // pred_fallthru
      _
  $region6: #{a_call__.1} parent=0 // loop_footer
    %s15 = sadd.s32 1, %s11
  $region7: #{a_call__.1} parent=0 // loop_footer_branch
    %10 = sbr.rel target = $region3
  $region8: #{a_call__.1} parent=0 // loop_exit
    _

</llo_original>
